<compile_context>
chip_gen: v7x
topology: tpu7x:2x2x1
jax: 0.10.0
libtpu: 0.0.40
codegen_flags: <defaults>
</compile_context>

<pallas_src>
import functools

import jax
import jax.numpy as jnp
from jax.experimental import pallas as pl
from jax.experimental.pallas import tpu as pltpu


# ---------------------------------------------------------------------------
# shape helpers (static Python ints)
# ---------------------------------------------------------------------------
def _conv_out_len(L, K, pad, stride=1):
    return (L + 2 * pad - K) // stride + 1


def _pool_out_len(L, K=2, stride=2, pad=1):
    return (L + 2 * pad - K) // stride + 1


def _round_up(x, m):
    return ((x + m - 1) // m) * m


# ---------------------------------------------------------------------------
# in-kernel building block: Conv1d(no bias) -> BN(folded) -> ReLU -> MaxPool
# operates on a single sample, channels-last (L, C); all shapes static.
# ---------------------------------------------------------------------------
def _layer(x, w2d, scale, shift, K, pad, pool_scr):
    L_in, C_in = x.shape
    C_out = w2d.shape[1]
    L_conv = L_in + 2 * pad - K + 1
    L_pool = L_conv // 2 + 1

    # --- Conv1d as one im2col matmul on the MXU -----------------------------
    z = jnp.zeros((pad, C_in), jnp.float32)
    x_pad = jnp.concatenate([z, x, z], axis=0)                 # (L_in+2p, C_in)
    # im2col: K static shifted views concatenated on the lane axis.
    xc = jnp.concatenate([x_pad[k:k + L_conv, :] for k in range(K)], axis=1)
    y = jnp.dot(xc, w2d, preferred_element_type=jnp.float32)   # (L_conv, C_out)

    # --- folded BatchNorm (eval mode) + ReLU ---------------------------------
    y = jnp.maximum(y * scale + shift, 0.0)

    # --- MaxPool1d(kernel=2, stride=2, padding=1), vectorized ----------------
    # PyTorch pads implicitly with -inf:
    #   out[i] = max(y_pad[2i], y_pad[2i+1]) with y_pad = [-inf, y, (-inf?)]
    # Stage the -inf-padded activation in a lane-dense VMEM scratch, then take
    # the pairwise max of two stride-2 sublane reads.
    C_scr = pool_scr.shape[1]                                  # 128-multiple
    if C_out < C_scr:
        y = jnp.concatenate(
            [y, jnp.zeros((L_conv, C_scr - C_out), jnp.float32)], axis=1)
    neg = jnp.full((1, C_scr), -jnp.inf, jnp.float32)
    tail = [neg] * (2 * L_pool - L_conv - 1)                   # 0 or 1 rows
    pool_scr[...] = jnp.concatenate([neg, y] + tail, axis=0)   # (2*L_pool, C_scr)
    h = jnp.maximum(pool_scr[pl.ds(0, L_pool, stride=2), :],
                    pool_scr[pl.ds(1, L_pool, stride=2), :])   # (L_pool, C_scr)
    return h[:, :C_out] if C_out < C_scr else h


# ---------------------------------------------------------------------------
# Pallas kernel: whole 3-layer network for a block of Bn samples per grid step
# ---------------------------------------------------------------------------
def tstcc_kernel(x_ref, w1_ref, s1_ref, b1_ref, w2_ref, s2_ref, b2_ref,
                 w3_ref, s3_ref, b3_ref, o_ref, p1_scr, p2_scr, p3_scr,
                 *, k1, bn):
    w1 = w1_ref[...]; s1 = s1_ref[...]; b1 = b1_ref[...]
    w2 = w2_ref[...]; s2 = s2_ref[...]; b2 = b2_ref[...]
    w3 = w3_ref[...]; s3 = s3_ref[...]; b3 = b3_ref[...]

    for b in range(bn):                                        # static unroll
        x = x_ref[b].astype(jnp.float32)                       # (L_in, C_in)
        h = _layer(x, w1, s1, b1, k1, k1 // 2, p1_scr)
        # Dropout(p=0.35) is identity at inference.
        h = _layer(h, w2, s2, b2, 8, 4, p2_scr)
        h = _layer(h, w3, s3, b3, 8, 4, p3_scr)
        o_ref[b] = h.astype(o_ref.dtype)                       # (L3, C_pad)


def tstcc_forward(x_ncl, params, kernel_size=8, block_n=8):
    """x_ncl: (N, C_in, L) float32  ->  (N, out_dim, L_out) float32."""
    N, C_in, L = x_ncl.shape
    w1, s1, b1, w2, s2, b2, w3, s3, b3 = params
    out_dim = w3.shape[2]

    pad1 = kernel_size // 2
    L_c1 = _conv_out_len(L, kernel_size, pad1); L1 = _pool_out_len(L_c1)
    L_c2 = _conv_out_len(L1, 8, 4);             L2 = _pool_out_len(L_c2)
    L_c3 = _conv_out_len(L2, 8, 4);             L3 = _pool_out_len(L_c3)

    # lane-dense output channel count (multiple of 128)
    C_pad = _round_up(out_dim, 128)

    # pre-reshape weights for im2col: (K, Cin, Cout) -> (K*Cin, Cout)
    w1_2d = w1.reshape(-1, w1.shape[2])
    w2_2d = w2.reshape(-1, w2.shape[2])
    w3_2d = jnp.pad(w3.reshape(-1, out_dim), ((0, 0), (0, C_pad - out_dim)))
    s3_p = jnp.pad(s3, ((0, 0), (0, C_pad - out_dim)), constant_values=1.0)
    b3_p = jnp.pad(b3, ((0, 0), (0, C_pad - out_dim)))

    # batch blocking
    Bn = max(1, min(block_n, N))
    N_pad = _round_up(N, Bn)
    x_nlc = jnp.transpose(x_ncl, (0, 2, 1))                    # channels-last
    if N_pad != N:
        x_nlc = jnp.pad(x_nlc, ((0, N_pad - N), (0, 0), (0, 0)))

    flops = 2 * N_pad * (L_c1 * (kernel_size * C_in) * 32
                         + L_c2 * (8 * 32) * 64
                         + L_c3 * (8 * 64) * C_pad)
    bytes_accessed = 4 * (int(x_nlc.size) + int(w1_2d.size) + int(w2_2d.size)
                          + int(w3_2d.size) + int(s1.size) + int(b1.size)
                          + int(s2.size) + int(b2.size) + int(s3_p.size)
                          + int(b3_p.size) + N_pad * L3 * C_pad)

    def full_spec(a):
        nd = a.ndim
        return pl.BlockSpec(a.shape, lambda n, _nd=nd: (0,) * _nd)

    kern = functools.partial(tstcc_kernel, k1=kernel_size, bn=Bn)
    out = pl.pallas_call(
        kern,
        out_shape=jax.ShapeDtypeStruct((N_pad, L3, C_pad), jnp.float32),
        grid_spec=pltpu.PrefetchScalarGridSpec(
            num_scalar_prefetch=0,
            grid=(N_pad // Bn,),
            in_specs=[
                pl.BlockSpec((Bn, L, C_in), lambda n: (n, 0, 0)),
                full_spec(w1_2d), full_spec(s1), full_spec(b1),
                full_spec(w2_2d), full_spec(s2), full_spec(b2),
                full_spec(w3_2d), full_spec(s3_p), full_spec(b3_p),
            ],
            out_specs=pl.BlockSpec((Bn, L3, C_pad), lambda n: (n, 0, 0)),
            scratch_shapes=[
                pltpu.VMEM((2 * L1, 128), jnp.float32),
                pltpu.VMEM((2 * L2, 128), jnp.float32),
                pltpu.VMEM((2 * L3, C_pad), jnp.float32),
            ],
        ),
        compiler_params=pltpu.CompilerParams(
            dimension_semantics=("parallel",)),
        cost_estimate=pl.CostEstimate(
            flops=int(flops), transcendentals=0,
            bytes_accessed=int(bytes_accessed)),
    )(x_nlc, w1_2d, s1, b1, w2_2d, s2, b2, w3_2d, s3_p, b3_p)

    out = out[:N, :, :out_dim]
    return jnp.transpose(out, (0, 2, 1))                       # back to (N, C, L)


# ---------------------------------------------------------------------------
# deterministic parameter init (mirrors nn.Conv1d / nn.BatchNorm1d shapes)
# ---------------------------------------------------------------------------
def init_params(key, in_dim, out_dim, kernel_size=8):
    keys = jax.random.split(key, 15)

    def conv_w(k, cin, cout, K):
        # PyTorch Conv1d weight is (cout, cin, K); kernel consumes (K, cin, cout).
        w = jax.random.normal(k, (cout, cin, K), jnp.float32)
        w = w * (1.0 / jnp.sqrt(float(cin * K)))
        return jnp.transpose(w, (2, 1, 0))

    def bn(kg, kb, km, kv, c, eps=1e-5):
        gamma = 1.0 + 0.1 * jax.random.normal(kg, (c,), jnp.float32)
        beta = 0.1 * jax.random.normal(kb, (c,), jnp.float32)
        mean = 0.1 * jax.random.normal(km, (c,), jnp.float32)
        var = jax.nn.softplus(jax.random.normal(kv, (c,), jnp.float32)) + 0.5
        scale = gamma / jnp.sqrt(var + eps)
        shift = beta - mean * scale
        return scale.reshape(1, c), shift.reshape(1, c)

    w1 = conv_w(keys[0], in_dim, 32, kernel_size)
    s1, b1 = bn(keys[1], keys[2], keys[3], keys[4], 32)
    w2 = conv_w(keys[5], 32, 64, 8)
    s2, b2 = bn(keys[6], keys[7], keys[8], keys[9], 64)
    w3 = conv_w(keys[10], 64, out_dim, 8)
    s3, b3 = bn(keys[11], keys[12], keys[13], keys[14], out_dim)
    return (w1, s1, b1, w2, s2, b2, w3, s3, b3)


# ---------------------------------------------------------------------------
# pure-JAX reference (independent path: lax.conv + lax.reduce_window)
# ---------------------------------------------------------------------------
def reference_forward(x_ncl, params, kernel_size=8):
    w1, s1, b1, w2, s2, b2, w3, s3, b3 = params

    def block(x, w_kco, scale, shift, K, pad):
        w = jnp.transpose(w_kco, (2, 1, 0))                    # (O, I, K)
        y = jax.lax.conv_general_dilated(
            x, w, window_strides=(1,), padding=[(pad, pad)],
            dimension_numbers=("NCH", "OIH", "NCH"),
            precision=jax.lax.Precision.HIGHEST)
        y = y * scale.reshape(1, -1, 1) + shift.reshape(1, -1, 1)
        y = jnp.maximum(y, 0.0)
        y = jax.lax.reduce_window(
            y, -jnp.inf, jax.lax.max,
            window_dimensions=(1, 1, 2), window_strides=(1, 1, 2),
            padding=[(0, 0), (0, 0), (1, 1)])
        return y

    x = block(x_ncl, w1, s1, b1, kernel_size, kernel_size // 2)
    x = block(x, w2, s2, b2, 8, 4)
    x = block(x, w3, s3, b3, 8, 4)
    return x


if __name__ == "__main__":
    key = jax.random.PRNGKey(0)
    kx, kp = jax.random.split(key)

    N, in_dim, L, out_dim, ksz = 2, 4, 16, 16, 8
    x = jax.random.normal(kx, (N, in_dim, L), jnp.float32)     # PyTorch NCL input
    params = init_params(kp, in_dim, out_dim, ksz)

    out = tstcc_forward(x, params, kernel_size=ksz)
    out = jax.block_until_ready(out)

    ref = reference_forward(x, params, kernel_size=ksz)
    assert out.shape == ref.shape, (out.shape, ref.shape)
    assert bool(jnp.allclose(out, ref, atol=1e-3, rtol=1e-3))

    print("KERNEL_OK")
</pallas_src>

<mosaic_0001>
module attributes {stable_mosaic.version = 11 : i64} {
  func.func @tstcc_kernel(%arg0: i32, %arg1: memref<2x16x4xf32, #tpu.memory_space<vmem>>, %arg2: memref<32x32xf32, #tpu.memory_space<vmem>>, %arg3: memref<1x32xf32, #tpu.memory_space<vmem>>, %arg4: memref<1x32xf32, #tpu.memory_space<vmem>>, %arg5: memref<256x64xf32, #tpu.memory_space<vmem>>, %arg6: memref<1x64xf32, #tpu.memory_space<vmem>>, %arg7: memref<1x64xf32, #tpu.memory_space<vmem>>, %arg8: memref<512x128xf32, #tpu.memory_space<vmem>>, %arg9: memref<1x128xf32, #tpu.memory_space<vmem>>, %arg10: memref<1x128xf32, #tpu.memory_space<vmem>>, %arg11: memref<2x4x128xf32, #tpu.memory_space<vmem>>, %arg12: memref<18x128xf32, #tpu.memory_space<vmem>>, %arg13: memref<12x128xf32, #tpu.memory_space<vmem>>, %arg14: memref<8x128xf32, #tpu.memory_space<vmem>>) attributes {dimension_semantics = [#tpu.dimension_semantics<parallel>], iteration_bounds = array<i64: 1>, scalar_prefetch = 0 : i64, scratch_operands = 3 : i64, tpu.core_type = #tpu.core_type<tc>, window_params = [{transform_indices = @transform_0, window_bounds = array<i64: 2, 16, 4>}, {pipeline_mode = #tpu.pipeline_mode<synchronous>, transform_indices = @transform_1, window_bounds = array<i64: 32, 32>}, {pipeline_mode = #tpu.pipeline_mode<synchronous>, transform_indices = @transform_2, window_bounds = array<i64: 1, 32>}, {pipeline_mode = #tpu.pipeline_mode<synchronous>, transform_indices = @transform_3, window_bounds = array<i64: 1, 32>}, {pipeline_mode = #tpu.pipeline_mode<synchronous>, transform_indices = @transform_4, window_bounds = array<i64: 256, 64>}, {pipeline_mode = #tpu.pipeline_mode<synchronous>, transform_indices = @transform_5, window_bounds = array<i64: 1, 64>}, {pipeline_mode = #tpu.pipeline_mode<synchronous>, transform_indices = @transform_6, window_bounds = array<i64: 1, 64>}, {pipeline_mode = #tpu.pipeline_mode<synchronous>, transform_indices = @transform_7, window_bounds = array<i64: 512, 128>}, {pipeline_mode = #tpu.pipeline_mode<synchronous>, transform_indices = @transform_8, window_bounds = array<i64: 1, 128>}, {pipeline_mode = #tpu.pipeline_mode<synchronous>, transform_indices = @transform_9, window_bounds = array<i64: 1, 128>}, {transform_indices = @transform_10, window_bounds = array<i64: 2, 4, 128>}]} {
    %c0 = arith.constant 0 : index
    %c0_0 = arith.constant 0 : index
    %0 = vector.load %arg2[%c0, %c0_0] : memref<32x32xf32, #tpu.memory_space<vmem>>, vector<32x32xf32>
    %c0_1 = arith.constant 0 : index
    %c0_2 = arith.constant 0 : index
    %1 = vector.load %arg3[%c0_1, %c0_2] : memref<1x32xf32, #tpu.memory_space<vmem>>, vector<1x32xf32>
    %c0_3 = arith.constant 0 : index
    %c0_4 = arith.constant 0 : index
    %2 = vector.load %arg4[%c0_3, %c0_4] : memref<1x32xf32, #tpu.memory_space<vmem>>, vector<1x32xf32>
    %c0_5 = arith.constant 0 : index
    %c0_6 = arith.constant 0 : index
    %3 = vector.load %arg5[%c0_5, %c0_6] : memref<256x64xf32, #tpu.memory_space<vmem>>, vector<256x64xf32>
    %c0_7 = arith.constant 0 : index
    %c0_8 = arith.constant 0 : index
    %4 = vector.load %arg6[%c0_7, %c0_8] : memref<1x64xf32, #tpu.memory_space<vmem>>, vector<1x64xf32>
    %c0_9 = arith.constant 0 : index
    %c0_10 = arith.constant 0 : index
    %5 = vector.load %arg7[%c0_9, %c0_10] : memref<1x64xf32, #tpu.memory_space<vmem>>, vector<1x64xf32>
    %c0_11 = arith.constant 0 : index
    %c0_12 = arith.constant 0 : index
    %6 = vector.load %arg8[%c0_11, %c0_12] : memref<512x128xf32, #tpu.memory_space<vmem>>, vector<512x128xf32>
    %c0_13 = arith.constant 0 : index
    %c0_14 = arith.constant 0 : index
    %7 = vector.load %arg9[%c0_13, %c0_14] : memref<1x128xf32, #tpu.memory_space<vmem>>, vector<1x128xf32>
    %c0_15 = arith.constant 0 : index
    %c0_16 = arith.constant 0 : index
    %8 = vector.load %arg10[%c0_15, %c0_16] : memref<1x128xf32, #tpu.memory_space<vmem>>, vector<1x128xf32>
    %c0_17 = arith.constant 0 : index
    %c0_18 = arith.constant 0 : index
    %c0_19 = arith.constant 0 : index
    %9 = vector.load %arg1[%c0_17, %c0_18, %c0_19] : memref<2x16x4xf32, #tpu.memory_space<vmem>>, vector<1x16x4xf32>
    %10 = vector.shape_cast %9 : vector<1x16x4xf32> to vector<16x4xf32>
    %cst = arith.constant 0.000000e+00 : f32
    %11 = vector.broadcast %cst : f32 to vector<4x4xf32>
    %12 = tpu.concatenate %11, %10, %11 in 0 : vector<4x4xf32>, vector<16x4xf32>, vector<4x4xf32> -> vector<24x4xf32>
    %13 = vector.extract_strided_slice %12 {offsets = [0, 0], sizes = [17, 4], strides = [1, 1]} : vector<24x4xf32> to vector<17x4xf32>
    %14 = vector.extract_strided_slice %12 {offsets = [1, 0], sizes = [17, 4], strides = [1, 1]} : vector<24x4xf32> to vector<17x4xf32>
    %15 = vector.extract_strided_slice %12 {offsets = [2, 0], sizes = [17, 4], strides = [1, 1]} : vector<24x4xf32> to vector<17x4xf32>
    %16 = vector.extract_strided_slice %12 {offsets = [3, 0], sizes = [17, 4], strides = [1, 1]} : vector<24x4xf32> to vector<17x4xf32>
    %17 = vector.extract_strided_slice %12 {offsets = [4, 0], sizes = [17, 4], strides = [1, 1]} : vector<24x4xf32> to vector<17x4xf32>
    %18 = vector.extract_strided_slice %12 {offsets = [5, 0], sizes = [17, 4], strides = [1, 1]} : vector<24x4xf32> to vector<17x4xf32>
    %19 = vector.extract_strided_slice %12 {offsets = [6, 0], sizes = [17, 4], strides = [1, 1]} : vector<24x4xf32> to vector<17x4xf32>
    %20 = vector.extract_strided_slice %12 {offsets = [7, 0], sizes = [17, 4], strides = [1, 1]} : vector<24x4xf32> to vector<17x4xf32>
    %21 = tpu.concatenate %13, %14, %15, %16, %17, %18, %19, %20 in 1 : vector<17x4xf32>, vector<17x4xf32>, vector<17x4xf32>, vector<17x4xf32>, vector<17x4xf32>, vector<17x4xf32>, vector<17x4xf32>, vector<17x4xf32> -> vector<17x32xf32>
    %cst_20 = arith.constant dense<0.000000e+00> : vector<17x32xf32>
    %22 = tpu.matmul %21, %0, %cst_20 {dimension_numbers = #tpu.dot_dimension_numbers<[1], [0], [0], [1], [0, 0, 1, 1], [], []>} : vector<17x32xf32>, vector<32x32xf32>, vector<17x32xf32> -> vector<17x32xf32>
    %23 = vector.broadcast %1 : vector<1x32xf32> to vector<17x32xf32>
    %24 = arith.mulf %22, %23 : vector<17x32xf32>
    %25 = vector.broadcast %2 : vector<1x32xf32> to vector<17x32xf32>
    %26 = arith.addf %24, %25 : vector<17x32xf32>
    %cst_21 = arith.constant 0.000000e+00 : f32
    %27 = vector.broadcast %cst_21 : f32 to vector<17x32xf32>
    %28 = arith.maximumf %26, %27 : vector<17x32xf32>
    %cst_22 = arith.constant 0.000000e+00 : f32
    %29 = vector.broadcast %cst_22 : f32 to vector<17x96xf32>
    %30 = tpu.concatenate %28, %29 in 1 : vector<17x32xf32>, vector<17x96xf32> -> vector<17x128xf32>
    %cst_23 = arith.constant 0xFF800000 : f32
    %31 = vector.broadcast %cst_23 : f32 to vector<1x128xf32>
    %32 = tpu.concatenate %31, %30 in 0 : vector<1x128xf32>, vector<17x128xf32> -> vector<18x128xf32>
    %c0_24 = arith.constant 0 : index
    %c0_25 = arith.constant 0 : index
    %33 = vector.load %arg12[%c0_24, %c0_25] : memref<18x128xf32, #tpu.memory_space<vmem>>, vector<18x128xf32>
    tpu.vector_store %arg12[%c0_24, %c0_25], %32 {strides = array<i32>} : memref<18x128xf32, #tpu.memory_space<vmem>>, vector<18x128xf32>,
    %c0_26 = arith.constant 0 : index
    %c0_27 = arith.constant 0 : index
    %34 = tpu.strided_load %arg12[%c0_26, %c0_27] {strides = array<i32: 2, 1>} : memref<18x128xf32, #tpu.memory_space<vmem>>, vector<9x128xf32>
    %c1 = arith.constant 1 : index
    %c0_28 = arith.constant 0 : index
    %35 = tpu.strided_load %arg12[%c1, %c0_28] {strides = array<i32: 2, 1>} : memref<18x128xf32, #tpu.memory_space<vmem>>, vector<9x128xf32>
    %36 = arith.maximumf %34, %35 : vector<9x128xf32>
    %37 = vector.extract_strided_slice %36 {offsets = [0, 0], sizes = [9, 32], strides = [1, 1]} : vector<9x128xf32> to vector<9x32xf32>
    %cst_29 = arith.constant 0.000000e+00 : f32
    %38 = vector.broadcast %cst_29 : f32 to vector<4x32xf32>
    %39 = tpu.concatenate %38, %37, %38 in 0 : vector<4x32xf32>, vector<9x32xf32>, vector<4x32xf32> -> vector<17x32xf32>
    %40 = vector.extract_strided_slice %39 {offsets = [0, 0], sizes = [10, 32], strides = [1, 1]} : vector<17x32xf32> to vector<10x32xf32>
    %41 = vector.extract_strided_slice %39 {offsets = [1, 0], sizes = [10, 32], strides = [1, 1]} : vector<17x32xf32> to vector<10x32xf32>
    %42 = vector.extract_strided_slice %39 {offsets = [2, 0], sizes = [10, 32], strides = [1, 1]} : vector<17x32xf32> to vector<10x32xf32>
    %43 = vector.extract_strided_slice %39 {offsets = [3, 0], sizes = [10, 32], strides = [1, 1]} : vector<17x32xf32> to vector<10x32xf32>
    %44 = vector.extract_strided_slice %39 {offsets = [4, 0], sizes = [10, 32], strides = [1, 1]} : vector<17x32xf32> to vector<10x32xf32>
    %45 = vector.extract_strided_slice %39 {offsets = [5, 0], sizes = [10, 32], strides = [1, 1]} : vector<17x32xf32> to vector<10x32xf32>
    %46 = vector.extract_strided_slice %39 {offsets = [6, 0], sizes = [10, 32], strides = [1, 1]} : vector<17x32xf32> to vector<10x32xf32>
    %47 = vector.extract_strided_slice %39 {offsets = [7, 0], sizes = [10, 32], strides = [1, 1]} : vector<17x32xf32> to vector<10x32xf32>
    %48 = tpu.concatenate %40, %41, %42, %43, %44, %45, %46, %47 in 1 : vector<10x32xf32>, vector<10x32xf32>, vector<10x32xf32>, vector<10x32xf32>, vector<10x32xf32>, vector<10x32xf32>, vector<10x32xf32>, vector<10x32xf32> -> vector<10x256xf32>
    %cst_30 = arith.constant dense<0.000000e+00> : vector<10x64xf32>
    %49 = tpu.matmul %48, %3, %cst_30 {dimension_numbers = #tpu.dot_dimension_numbers<[1], [0], [0], [1], [0, 0, 1, 1], [], []>} : vector<10x256xf32>, vector<256x64xf32>, vector<10x64xf32> -> vector<10x64xf32>
    %50 = vector.broadcast %4 : vector<1x64xf32> to vector<10x64xf32>
    %51 = arith.mulf %49, %50 : vector<10x64xf32>
    %52 = vector.broadcast %5 : vector<1x64xf32> to vector<10x64xf32>
    %53 = arith.addf %51, %52 : vector<10x64xf32>
    %cst_31 = arith.constant 0.000000e+00 : f32
    %54 = vector.broadcast %cst_31 : f32 to vector<10x64xf32>
    %55 = arith.maximumf %53, %54 : vector<10x64xf32>
    %cst_32 = arith.constant 0.000000e+00 : f32
    %56 = vector.broadcast %cst_32 : f32 to vector<10x64xf32>
    %57 = tpu.concatenate %55, %56 in 1 : vector<10x64xf32>, vector<10x64xf32> -> vector<10x128xf32>
    %cst_33 = arith.constant 0xFF800000 : f32
    %58 = vector.broadcast %cst_33 : f32 to vector<1x128xf32>
    %59 = tpu.concatenate %58, %57, %58 in 0 : vector<1x128xf32>, vector<10x128xf32>, vector<1x128xf32> -> vector<12x128xf32>
    %c0_34 = arith.constant 0 : index
    %c0_35 = arith.constant 0 : index
    %60 = vector.load %arg13[%c0_34, %c0_35] : memref<12x128xf32, #tpu.memory_space<vmem>>, vector<12x128xf32>
    tpu.vector_store %arg13[%c0_34, %c0_35], %59 {strides = array<i32>} : memref<12x128xf32, #tpu.memory_space<vmem>>, vector<12x128xf32>,
    %c0_36 = arith.constant 0 : index
    %c0_37 = arith.constant 0 : index
    %61 = tpu.strided_load %arg13[%c0_36, %c0_37] {strides = array<i32: 2, 1>} : memref<12x128xf32, #tpu.memory_space<vmem>>, vector<6x128xf32>
    %c1_38 = arith.constant 1 : index
    %c0_39 = arith.constant 0 : index
    %62 = tpu.strided_load %arg13[%c1_38, %c0_39] {strides = array<i32: 2, 1>} : memref<12x128xf32, #tpu.memory_space<vmem>>, vector<6x128xf32>
    %63 = arith.maximumf %61, %62 : vector<6x128xf32>
    %64 = vector.extract_strided_slice %63 {offsets = [0, 0], sizes = [6, 64], strides = [1, 1]} : vector<6x128xf32> to vector<6x64xf32>
    %cst_40 = arith.constant 0.000000e+00 : f32
    %65 = vector.broadcast %cst_40 : f32 to vector<4x64xf32>
    %66 = tpu.concatenate %65, %64, %65 in 0 : vector<4x64xf32>, vector<6x64xf32>, vector<4x64xf32> -> vector<14x64xf32>
    %67 = vector.extract_strided_slice %66 {offsets = [0, 0], sizes = [7, 64], strides = [1, 1]} : vector<14x64xf32> to vector<7x64xf32>
    %68 = vector.extract_strided_slice %66 {offsets = [1, 0], sizes = [7, 64], strides = [1, 1]} : vector<14x64xf32> to vector<7x64xf32>
    %69 = vector.extract_strided_slice %66 {offsets = [2, 0], sizes = [7, 64], strides = [1, 1]} : vector<14x64xf32> to vector<7x64xf32>
    %70 = vector.extract_strided_slice %66 {offsets = [3, 0], sizes = [7, 64], strides = [1, 1]} : vector<14x64xf32> to vector<7x64xf32>
    %71 = vector.extract_strided_slice %66 {offsets = [4, 0], sizes = [7, 64], strides = [1, 1]} : vector<14x64xf32> to vector<7x64xf32>
    %72 = vector.extract_strided_slice %66 {offsets = [5, 0], sizes = [7, 64], strides = [1, 1]} : vector<14x64xf32> to vector<7x64xf32>
    %73 = vector.extract_strided_slice %66 {offsets = [6, 0], sizes = [7, 64], strides = [1, 1]} : vector<14x64xf32> to vector<7x64xf32>
    %74 = vector.extract_strided_slice %66 {offsets = [7, 0], sizes = [7, 64], strides = [1, 1]} : vector<14x64xf32> to vector<7x64xf32>
    %75 = tpu.concatenate %67, %68, %69, %70, %71, %72, %73, %74 in 1 : vector<7x64xf32>, vector<7x64xf32>, vector<7x64xf32>, vector<7x64xf32>, vector<7x64xf32>, vector<7x64xf32>, vector<7x64xf32>, vector<7x64xf32> -> vector<7x512xf32>
    %cst_41 = arith.constant dense<0.000000e+00> : vector<7x128xf32>
    %76 = tpu.matmul %75, %6, %cst_41 {dimension_numbers = #tpu.dot_dimension_numbers<[1], [0], [0], [1], [0, 0, 1, 1], [], []>} : vector<7x512xf32>, vector<512x128xf32>, vector<7x128xf32> -> vector<7x128xf32>
    %77 = vector.broadcast %7 : vector<1x128xf32> to vector<7x128xf32>
    %78 = arith.mulf %76, %77 : vector<7x128xf32>
    %79 = vector.broadcast %8 : vector<1x128xf32> to vector<7x128xf32>
    %80 = arith.addf %78, %79 : vector<7x128xf32>
    %cst_42 = arith.constant 0.000000e+00 : f32
    %81 = vector.broadcast %cst_42 : f32 to vector<7x128xf32>
    %82 = arith.maximumf %80, %81 : vector<7x128xf32>
    %cst_43 = arith.constant 0xFF800000 : f32
    %83 = vector.broadcast %cst_43 : f32 to vector<1x128xf32>
    %84 = tpu.concatenate %83, %82 in 0 : vector<1x128xf32>, vector<7x128xf32> -> vector<8x128xf32>
    %c0_44 = arith.constant 0 : index
    %c0_45 = arith.constant 0 : index
    %85 = vector.load %arg14[%c0_44, %c0_45] : memref<8x128xf32, #tpu.memory_space<vmem>>, vector<8x128xf32>
    tpu.vector_store %arg14[%c0_44, %c0_45], %84 {strides = array<i32>} : memref<8x128xf32, #tpu.memory_space<vmem>>, vector<8x128xf32>,
    %c0_46 = arith.constant 0 : index
    %c0_47 = arith.constant 0 : index
    %86 = tpu.strided_load %arg14[%c0_46, %c0_47] {strides = array<i32: 2, 1>} : memref<8x128xf32, #tpu.memory_space<vmem>>, vector<4x128xf32>
    %c1_48 = arith.constant 1 : index
    %c0_49 = arith.constant 0 : index
    %87 = tpu.strided_load %arg14[%c1_48, %c0_49] {strides = array<i32: 2, 1>} : memref<8x128xf32, #tpu.memory_space<vmem>>, vector<4x128xf32>
    %88 = arith.maximumf %86, %87 : vector<4x128xf32>
    %c0_50 = arith.constant 0 : index
    %c0_51 = arith.constant 0 : index
    %c0_52 = arith.constant 0 : index
    %89 = vector.load %arg11[%c0_50, %c0_51, %c0_52] : memref<2x4x128xf32, #tpu.memory_space<vmem>>, vector<1x4x128xf32>
    %90 = vector.shape_cast %89 : vector<1x4x128xf32> to vector<4x128xf32>
    %91 = vector.shape_cast %88 : vector<4x128xf32> to vector<1x4x128xf32>
    tpu.vector_store %arg11[%c0_50, %c0_51, %c0_52], %91 {strides = array<i32>} : memref<2x4x128xf32, #tpu.memory_space<vmem>>, vector<1x4x128xf32>,
    %c1_53 = arith.constant 1 : index
    %c0_54 = arith.constant 0 : index
    %c0_55 = arith.constant 0 : index
    %92 = vector.load %arg1[%c1_53, %c0_54, %c0_55] : memref<2x16x4xf32, #tpu.memory_space<vmem>>, vector<1x16x4xf32>
    %93 = vector.shape_cast %92 : vector<1x16x4xf32> to vector<16x4xf32>
    %cst_56 = arith.constant 0.000000e+00 : f32
    %94 = vector.broadcast %cst_56 : f32 to vector<4x4xf32>
    %95 = tpu.concatenate %94, %93, %94 in 0 : vector<4x4xf32>, vector<16x4xf32>, vector<4x4xf32> -> vector<24x4xf32>
    %96 = vector.extract_strided_slice %95 {offsets = [0, 0], sizes = [17, 4], strides = [1, 1]} : vector<24x4xf32> to vector<17x4xf32>
    %97 = vector.extract_strided_slice %95 {offsets = [1, 0], sizes = [17, 4], strides = [1, 1]} : vector<24x4xf32> to vector<17x4xf32>
    %98 = vector.extract_strided_slice %95 {offsets = [2, 0], sizes = [17, 4], strides = [1, 1]} : vector<24x4xf32> to vector<17x4xf32>
    %99 = vector.extract_strided_slice %95 {offsets = [3, 0], sizes = [17, 4], strides = [1, 1]} : vector<24x4xf32> to vector<17x4xf32>
    %100 = vector.extract_strided_slice %95 {offsets = [4, 0], sizes = [17, 4], strides = [1, 1]} : vector<24x4xf32> to vector<17x4xf32>
    %101 = vector.extract_strided_slice %95 {offsets = [5, 0], sizes = [17, 4], strides = [1, 1]} : vector<24x4xf32> to vector<17x4xf32>
    %102 = vector.extract_strided_slice %95 {offsets = [6, 0], sizes = [17, 4], strides = [1, 1]} : vector<24x4xf32> to vector<17x4xf32>
    %103 = vector.extract_strided_slice %95 {offsets = [7, 0], sizes = [17, 4], strides = [1, 1]} : vector<24x4xf32> to vector<17x4xf32>
    %104 = tpu.concatenate %96, %97, %98, %99, %100, %101, %102, %103 in 1 : vector<17x4xf32>, vector<17x4xf32>, vector<17x4xf32>, vector<17x4xf32>, vector<17x4xf32>, vector<17x4xf32>, vector<17x4xf32>, vector<17x4xf32> -> vector<17x32xf32>
    %cst_57 = arith.constant dense<0.000000e+00> : vector<17x32xf32>
    %105 = tpu.matmul %104, %0, %cst_57 {dimension_numbers = #tpu.dot_dimension_numbers<[1], [0], [0], [1], [0, 0, 1, 1], [], []>} : vector<17x32xf32>, vector<32x32xf32>, vector<17x32xf32> -> vector<17x32xf32>
    %106 = vector.broadcast %1 : vector<1x32xf32> to vector<17x32xf32>
    %107 = arith.mulf %105, %106 : vector<17x32xf32>
    %108 = vector.broadcast %2 : vector<1x32xf32> to vector<17x32xf32>
    %109 = arith.addf %107, %108 : vector<17x32xf32>
    %cst_58 = arith.constant 0.000000e+00 : f32
    %110 = vector.broadcast %cst_58 : f32 to vector<17x32xf32>
    %111 = arith.maximumf %109, %110 : vector<17x32xf32>
    %cst_59 = arith.constant 0.000000e+00 : f32
    %112 = vector.broadcast %cst_59 : f32 to vector<17x96xf32>
    %113 = tpu.concatenate %111, %112 in 1 : vector<17x32xf32>, vector<17x96xf32> -> vector<17x128xf32>
    %cst_60 = arith.constant 0xFF800000 : f32
    %114 = vector.broadcast %cst_60 : f32 to vector<1x128xf32>
    %115 = tpu.concatenate %114, %113 in 0 : vector<1x128xf32>, vector<17x128xf32> -> vector<18x128xf32>
    %c0_61 = arith.constant 0 : index
    %c0_62 = arith.constant 0 : index
    %116 = vector.load %arg12[%c0_61, %c0_62] : memref<18x128xf32, #tpu.memory_space<vmem>>, vector<18x128xf32>
    tpu.vector_store %arg12[%c0_61, %c0_62], %115 {strides = array<i32>} : memref<18x128xf32, #tpu.memory_space<vmem>>, vector<18x128xf32>,
    %c0_63 = arith.constant 0 : index
    %c0_64 = arith.constant 0 : index
    %117 = tpu.strided_load %arg12[%c0_63, %c0_64] {strides = array<i32: 2, 1>} : memref<18x128xf32, #tpu.memory_space<vmem>>, vector<9x128xf32>
    %c1_65 = arith.constant 1 : index
    %c0_66 = arith.constant 0 : index
    %118 = tpu.strided_load %arg12[%c1_65, %c0_66] {strides = array<i32: 2, 1>} : memref<18x128xf32, #tpu.memory_space<vmem>>, vector<9x128xf32>
    %119 = arith.maximumf %117, %118 : vector<9x128xf32>
    %120 = vector.extract_strided_slice %119 {offsets = [0, 0], sizes = [9, 32], strides = [1, 1]} : vector<9x128xf32> to vector<9x32xf32>
    %cst_67 = arith.constant 0.000000e+00 : f32
    %121 = vector.broadcast %cst_67 : f32 to vector<4x32xf32>
    %122 = tpu.concatenate %121, %120, %121 in 0 : vector<4x32xf32>, vector<9x32xf32>, vector<4x32xf32> -> vector<17x32xf32>
    %123 = vector.extract_strided_slice %122 {offsets = [0, 0], sizes = [10, 32], strides = [1, 1]} : vector<17x32xf32> to vector<10x32xf32>
    %124 = vector.extract_strided_slice %122 {offsets = [1, 0], sizes = [10, 32], strides = [1, 1]} : vector<17x32xf32> to vector<10x32xf32>
    %125 = vector.extract_strided_slice %122 {offsets = [2, 0], sizes = [10, 32], strides = [1, 1]} : vector<17x32xf32> to vector<10x32xf32>
    %126 = vector.extract_strided_slice %122 {offsets = [3, 0], sizes = [10, 32], strides = [1, 1]} : vector<17x32xf32> to vector<10x32xf32>
    %127 = vector.extract_strided_slice %122 {offsets = [4, 0], sizes = [10, 32], strides = [1, 1]} : vector<17x32xf32> to vector<10x32xf32>
    %128 = vector.extract_strided_slice %122 {offsets = [5, 0], sizes = [10, 32], strides = [1, 1]} : vector<17x32xf32> to vector<10x32xf32>
    %129 = vector.extract_strided_slice %122 {offsets = [6, 0], sizes = [10, 32], strides = [1, 1]} : vector<17x32xf32> to vector<10x32xf32>
    %130 = vector.extract_strided_slice %122 {offsets = [7, 0], sizes = [10, 32], strides = [1, 1]} : vector<17x32xf32> to vector<10x32xf32>
    %131 = tpu.concatenate %123, %124, %125, %126, %127, %128, %129, %130 in 1 : vector<10x32xf32>, vector<10x32xf32>, vector<10x32xf32>, vector<10x32xf32>, vector<10x32xf32>, vector<10x32xf32>, vector<10x32xf32>, vector<10x32xf32> -> vector<10x256xf32>
    %cst_68 = arith.constant dense<0.000000e+00> : vector<10x64xf32>
    %132 = tpu.matmul %131, %3, %cst_68 {dimension_numbers = #tpu.dot_dimension_numbers<[1], [0], [0], [1], [0, 0, 1, 1], [], []>} : vector<10x256xf32>, vector<256x64xf32>, vector<10x64xf32> -> vector<10x64xf32>
    %133 = vector.broadcast %4 : vector<1x64xf32> to vector<10x64xf32>
    %134 = arith.mulf %132, %133 : vector<10x64xf32>
    %135 = vector.broadcast %5 : vector<1x64xf32> to vector<10x64xf32>
    %136 = arith.addf %134, %135 : vector<10x64xf32>
    %cst_69 = arith.constant 0.000000e+00 : f32
    %137 = vector.broadcast %cst_69 : f32 to vector<10x64xf32>
    %138 = arith.maximumf %136, %137 : vector<10x64xf32>
    %cst_70 = arith.constant 0.000000e+00 : f32
    %139 = vector.broadcast %cst_70 : f32 to vector<10x64xf32>
    %140 = tpu.concatenate %138, %139 in 1 : vector<10x64xf32>, vector<10x64xf32> -> vector<10x128xf32>
    %cst_71 = arith.constant 0xFF800000 : f32
    %141 = vector.broadcast %cst_71 : f32 to vector<1x128xf32>
    %142 = tpu.concatenate %141, %140, %141 in 0 : vector<1x128xf32>, vector<10x128xf32>, vector<1x128xf32> -> vector<12x128xf32>
    %c0_72 = arith.constant 0 : index
    %c0_73 = arith.constant 0 : index
    %143 = vector.load %arg13[%c0_72, %c0_73] : memref<12x128xf32, #tpu.memory_space<vmem>>, vector<12x128xf32>
    tpu.vector_store %arg13[%c0_72, %c0_73], %142 {strides = array<i32>} : memref<12x128xf32, #tpu.memory_space<vmem>>, vector<12x128xf32>,
    %c0_74 = arith.constant 0 : index
    %c0_75 = arith.constant 0 : index
    %144 = tpu.strided_load %arg13[%c0_74, %c0_75] {strides = array<i32: 2, 1>} : memref<12x128xf32, #tpu.memory_space<vmem>>, vector<6x128xf32>
    %c1_76 = arith.constant 1 : index
    %c0_77 = arith.constant 0 : index
    %145 = tpu.strided_load %arg13[%c1_76, %c0_77] {strides = array<i32: 2, 1>} : memref<12x128xf32, #tpu.memory_space<vmem>>, vector<6x128xf32>
    %146 = arith.maximumf %144, %145 : vector<6x128xf32>
    %147 = vector.extract_strided_slice %146 {offsets = [0, 0], sizes = [6, 64], strides = [1, 1]} : vector<6x128xf32> to vector<6x64xf32>
    %cst_78 = arith.constant 0.000000e+00 : f32
    %148 = vector.broadcast %cst_78 : f32 to vector<4x64xf32>
    %149 = tpu.concatenate %148, %147, %148 in 0 : vector<4x64xf32>, vector<6x64xf32>, vector<4x64xf32> -> vector<14x64xf32>
    %150 = vector.extract_strided_slice %149 {offsets = [0, 0], sizes = [7, 64], strides = [1, 1]} : vector<14x64xf32> to vector<7x64xf32>
    %151 = vector.extract_strided_slice %149 {offsets = [1, 0], sizes = [7, 64], strides = [1, 1]} : vector<14x64xf32> to vector<7x64xf32>
    %152 = vector.extract_strided_slice %149 {offsets = [2, 0], sizes = [7, 64], strides = [1, 1]} : vector<14x64xf32> to vector<7x64xf32>
    %153 = vector.extract_strided_slice %149 {offsets = [3, 0], sizes = [7, 64], strides = [1, 1]} : vector<14x64xf32> to vector<7x64xf32>
    %154 = vector.extract_strided_slice %149 {offsets = [4, 0], sizes = [7, 64], strides = [1, 1]} : vector<14x64xf32> to vector<7x64xf32>
    %155 = vector.extract_strided_slice %149 {offsets = [5, 0], sizes = [7, 64], strides = [1, 1]} : vector<14x64xf32> to vector<7x64xf32>
    %156 = vector.extract_strided_slice %149 {offsets = [6, 0], sizes = [7, 64], strides = [1, 1]} : vector<14x64xf32> to vector<7x64xf32>
    %157 = vector.extract_strided_slice %149 {offsets = [7, 0], sizes = [7, 64], strides = [1, 1]} : vector<14x64xf32> to vector<7x64xf32>
    %158 = tpu.concatenate %150, %151, %152, %153, %154, %155, %156, %157 in 1 : vector<7x64xf32>, vector<7x64xf32>, vector<7x64xf32>, vector<7x64xf32>, vector<7x64xf32>, vector<7x64xf32>, vector<7x64xf32>, vector<7x64xf32> -> vector<7x512xf32>
    %cst_79 = arith.constant dense<0.000000e+00> : vector<7x128xf32>
    %159 = tpu.matmul %158, %6, %cst_79 {dimension_numbers = #tpu.dot_dimension_numbers<[1], [0], [0], [1], [0, 0, 1, 1], [], []>} : vector<7x512xf32>, vector<512x128xf32>, vector<7x128xf32> -> vector<7x128xf32>
    %160 = vector.broadcast %7 : vector<1x128xf32> to vector<7x128xf32>
    %161 = arith.mulf %159, %160 : vector<7x128xf32>
    %162 = vector.broadcast %8 : vector<1x128xf32> to vector<7x128xf32>
    %163 = arith.addf %161, %162 : vector<7x128xf32>
    %cst_80 = arith.constant 0.000000e+00 : f32
    %164 = vector.broadcast %cst_80 : f32 to vector<7x128xf32>
    %165 = arith.maximumf %163, %164 : vector<7x128xf32>
    %cst_81 = arith.constant 0xFF800000 : f32
    %166 = vector.broadcast %cst_81 : f32 to vector<1x128xf32>
    %167 = tpu.concatenate %166, %165 in 0 : vector<1x128xf32>, vector<7x128xf32> -> vector<8x128xf32>
    %c0_82 = arith.constant 0 : index
    %c0_83 = arith.constant 0 : index
    %168 = vector.load %arg14[%c0_82, %c0_83] : memref<8x128xf32, #tpu.memory_space<vmem>>, vector<8x128xf32>
    tpu.vector_store %arg14[%c0_82, %c0_83], %167 {strides = array<i32>} : memref<8x128xf32, #tpu.memory_space<vmem>>, vector<8x128xf32>,
    %c0_84 = arith.constant 0 : index
    %c0_85 = arith.constant 0 : index
    %169 = tpu.strided_load %arg14[%c0_84, %c0_85] {strides = array<i32: 2, 1>} : memref<8x128xf32, #tpu.memory_space<vmem>>, vector<4x128xf32>
    %c1_86 = arith.constant 1 : index
    %c0_87 = arith.constant 0 : index
    %170 = tpu.strided_load %arg14[%c1_86, %c0_87] {strides = array<i32: 2, 1>} : memref<8x128xf32, #tpu.memory_space<vmem>>, vector<4x128xf32>
    %171 = arith.maximumf %169, %170 : vector<4x128xf32>
    %c1_88 = arith.constant 1 : index
    %c0_89 = arith.constant 0 : index
    %c0_90 = arith.constant 0 : index
    %172 = vector.load %arg11[%c1_88, %c0_89, %c0_90] : memref<2x4x128xf32, #tpu.memory_space<vmem>>, vector<1x4x128xf32>
    %173 = vector.shape_cast %172 : vector<1x4x128xf32> to vector<4x128xf32>
    %174 = vector.shape_cast %171 : vector<4x128xf32> to vector<1x4x128xf32>
    tpu.vector_store %arg11[%c1_88, %c0_89, %c0_90], %174 {strides = array<i32>} : memref<2x4x128xf32, #tpu.memory_space<vmem>>, vector<1x4x128xf32>,
    return
  }
  func.func @transform_0(%arg0: i32) -> (i32, i32, i32) {
    %c0_i32 = arith.constant 0 : i32
    %c0_i32_0 = arith.constant 0 : i32
    %c0_i32_1 = arith.constant 0 : i32
    return %arg0, %c0_i32, %c0_i32_0 : i32, i32, i32
  }
  func.func @transform_1(%arg0: i32) -> (i32, i32) {
    %c0_i32 = arith.constant 0 : i32
    %c0_i32_0 = arith.constant 0 : i32
    %c0_i32_1 = arith.constant 0 : i32
    return %c0_i32, %c0_i32_0 : i32, i32
  }
  func.func @transform_2(%arg0: i32) -> (i32, i32) {
    %c0_i32 = arith.constant 0 : i32
    %c0_i32_0 = arith.constant 0 : i32
    %c0_i32_1 = arith.constant 0 : i32
    return %c0_i32, %c0_i32_0 : i32, i32
  }
  func.func @transform_3(%arg0: i32) -> (i32, i32) {
    %c0_i32 = arith.constant 0 : i32
    %c0_i32_0 = arith.constant 0 : i32
    %c0_i32_1 = arith.constant 0 : i32
    return %c0_i32, %c0_i32_0 : i32, i32
  }
  func.func @transform_4(%arg0: i32) -> (i32, i32) {
    %c0_i32 = arith.constant 0 : i32
    %c0_i32_0 = arith.constant 0 : i32
    %c0_i32_1 = arith.constant 0 : i32
    return %c0_i32, %c0_i32_0 : i32, i32
  }
  func.func @transform_5(%arg0: i32) -> (i32, i32) {
    %c0_i32 = arith.constant 0 : i32
    %c0_i32_0 = arith.constant 0 : i32
    %c0_i32_1 = arith.constant 0 : i32
    return %c0_i32, %c0_i32_0 : i32, i32
  }
  func.func @transform_6(%arg0: i32) -> (i32, i32) {
    %c0_i32 = arith.constant 0 : i32
    %c0_i32_0 = arith.constant 0 : i32
    %c0_i32_1 = arith.constant 0 : i32
    return %c0_i32, %c0_i32_0 : i32, i32
  }
  func.func @transform_7(%arg0: i32) -> (i32, i32) {
    %c0_i32 = arith.constant 0 : i32
    %c0_i32_0 = arith.constant 0 : i32
    %c0_i32_1 = arith.constant 0 : i32
    return %c0_i32, %c0_i32_0 : i32, i32
  }
  func.func @transform_8(%arg0: i32) -> (i32, i32) {
    %c0_i32 = arith.constant 0 : i32
    %c0_i32_0 = arith.constant 0 : i32
    %c0_i32_1 = arith.constant 0 : i32
    return %c0_i32, %c0_i32_0 : i32, i32
  }
  func.func @transform_9(%arg0: i32) -> (i32, i32) {
    %c0_i32 = arith.constant 0 : i32
    %c0_i32_0 = arith.constant 0 : i32
    %c0_i32_1 = arith.constant 0 : i32
    return %c0_i32, %c0_i32_0 : i32, i32
  }
  func.func @transform_10(%arg0: i32) -> (i32, i32, i32) {
    %c0_i32 = arith.constant 0 : i32
    %c0_i32_0 = arith.constant 0 : i32
    %c0_i32_1 = arith.constant 0 : i32
    return %arg0, %c0_i32, %c0_i32_0 : i32, i32, i32
  }
}

</mosaic_0001>

<llo_original>
// kernel: tpu_custom_call.1
$region0: #{tpu_custom_call.1}
  #allocation0 [shape = 'u32[]', space=smem, size = 0x4, offset = 0x4, fixed_abs, tag = 'smem constant byte address 0x4 - core index']
  #allocation1 [shape = 'u32[144,128]{1,0:T(1,128)}', space=vmem, size = 0x12000, scoped, tag = 'internal scratch']
  #allocation2 [shape = 'f32[18,128]{1,0:T(8,128)}', space=vmem, size = 0x3000, scoped, tag = 'scratch operand']
  #allocation3 [shape = 'f32[12,128]{1,0:T(8,128)}', space=vmem, size = 0x2000, scoped, tag = 'scratch operand']
  #allocation4 [shape = 'f32[8,128]{1,0:T(8,128)}', space=vmem, size = 0x1000, scoped, tag = 'scratch operand']
  %s0 = inlined_call_operand.vmem [shape: f32[2,16,4], index: 0, kind: input, shape index: {}]
  %s1 = inlined_call_operand.vmem [shape: f32[32,32], index: 1, kind: input, shape index: {}]
  %s2 = inlined_call_operand.vmem [shape: f32[1,32], index: 2, kind: input, shape index: {}]
  %s3 = inlined_call_operand.vmem [shape: f32[1,32], index: 3, kind: input, shape index: {}]
  %s4 = inlined_call_operand.vmem [shape: f32[256,64], index: 4, kind: input, shape index: {}]
  %s5 = inlined_call_operand.vmem [shape: f32[1,64], index: 5, kind: input, shape index: {}]
  %s6 = inlined_call_operand.vmem [shape: f32[1,64], index: 6, kind: input, shape index: {}]
  %s7 = inlined_call_operand.hbm [shape: f32[512,128], index: 7, kind: input, shape index: {}]
  %s8 = inlined_call_operand.vmem [shape: f32[1,128], index: 8, kind: input, shape index: {}]
  %s9 = inlined_call_operand.vmem [shape: f32[1,128], index: 9, kind: input, shape index: {}]
  %s10 = inlined_call_operand.hbm [shape: f32[2,4,128], index: 10, kind: output, shape index: {}]
  %s11 = sld [smem:[#allocation0]]
  $region54: #{tpu_custom_call.1} parent=0
    _
  %s13 = ssub.s32 1, %s11
  %s14 = scalar_select 0, %s13, %s11
  $region1: #{tpu_custom_call.1} parent=0
    #allocation5 [shape = 'u8[262144]{0}', space=vmem, size = 0x40000, scoped, tag = 'input window, operand 7, single buffered']
    #allocation6 [shape = 's32[1]{0}', space=sflag, size = 0x4, scoped, tag = 'scoped memory for tpu_custom_call.1']
    #allocation7 [shape = 's32[1]{0}', space=sflag, size = 0x4, scoped, tag = 'scoped memory for tpu_custom_call.1']
    #allocation8 [shape = 'u8[4096]{0}', space=vmem, size = 0x1000, scoped, tag = 'output window, operand 0, single buffered']
    %15 = vsyncpa [#allocation6], 0
    %16 = vsyncpa [#allocation7], 0
    // Predicated region
    $region2: #{tpu_custom_call.1} parent=1 // pred_check
      _
    $region3: #{tpu_custom_call.1} parent=1 // pred_check_branch
      %18 = sbr.rel (0) target = $region5
    $region4: #{tpu_custom_call.1} parent=1 // pred_region
      _
    $region5: #{tpu_custom_call.1} parent=1 // pred_fallthru
      _
    // Predicated region
    $region6: #{tpu_custom_call.1} parent=1 // pred_check
      _
    $region7: #{tpu_custom_call.1} parent=1 // pred_check_branch
      %20 = sbr.rel (0) target = $region9
    $region8: #{tpu_custom_call.1} parent=1 // pred_region
      _
    $region9: #{tpu_custom_call.1} parent=1 // pred_fallthru
      _
    // Predicated region
    $region10: #{tpu_custom_call.1} parent=1 // pred_check
      _
    $region11: #{tpu_custom_call.1} parent=1 // pred_check_branch
      %22 = sbr.rel (0) target = $region13
    $region12: #{tpu_custom_call.1} parent=1 // pred_region
      _
    $region13: #{tpu_custom_call.1} parent=1 // pred_fallthru
      _
    // Predicated region
    $region14: #{tpu_custom_call.1} parent=1 // pred_check
      _
    $region15: #{tpu_custom_call.1} parent=1 // pred_check_branch
      %24 = sbr.rel (0) target = $region17
    $region16: #{tpu_custom_call.1} parent=1 // pred_region
      _
    $region17: #{tpu_custom_call.1} parent=1 // pred_fallthru
      _
    // Predicated region
    $region18: #{tpu_custom_call.1} parent=1 // pred_check
      _
    $region19: #{tpu_custom_call.1} parent=1 // pred_check_branch
      %26 = sbr.rel (0) target = $region21
    $region20: #{tpu_custom_call.1} parent=1 // pred_region
      _
    $region21: #{tpu_custom_call.1} parent=1 // pred_fallthru
      _
    // Predicated region
    $region22: #{tpu_custom_call.1} parent=1 // pred_check
      _
    $region23: #{tpu_custom_call.1} parent=1 // pred_check_branch
      %28 = sbr.rel (0) target = $region25
    $region24: #{tpu_custom_call.1} parent=1 // pred_region
      _
    $region25: #{tpu_custom_call.1} parent=1 // pred_fallthru
      _
    // Predicated region
    $region26: #{tpu_custom_call.1} parent=1 // pred_check
      _
    $region27: #{tpu_custom_call.1} parent=1 // pred_check_branch
      %30 = sbr.rel (0) target = $region29
    $region28: #{tpu_custom_call.1} parent=1 // pred_region
      _
    $region29: #{tpu_custom_call.1} parent=1 // pred_fallthru
      _
    // Predicated region
    $region30: #{tpu_custom_call.1} parent=1 // pred_check
      _
    $region31: #{tpu_custom_call.1} parent=1 // pred_check_branch
      %32 = sbr.rel (0) target = $region33
    $region32: #{tpu_custom_call.1} parent=1 // pred_region
      %s34 = ssub.s32 8192, 8192
      %35 = vsyncadd [#allocation6], %s34
      %s36 = sshll.u32 [#allocation5], 4
      %s37 = int_to_ptr.vmem [resolvable:$true] %s36
      %42 = dma.hbm_to_vmem [thread:$0]  %s7, 8192, %s37, [#allocation6], 128, 128, 8
    $region33: #{tpu_custom_call.1} parent=1 // pred_fallthru
      _
    // Predicated region
    $region34: #{tpu_custom_call.1} parent=1 // pred_check
      _
    $region35: #{tpu_custom_call.1} parent=1 // pred_check_branch
      %44 = sbr.rel (0) target = $region37
    $region36: #{tpu_custom_call.1} parent=1 // pred_region
      _
    $region37: #{tpu_custom_call.1} parent=1 // pred_fallthru
      _
    // Predicated region
    $region38: #{tpu_custom_call.1} parent=1 // pred_check
      _
    $region39: #{tpu_custom_call.1} parent=1 // pred_check_branch
      %46 = sbr.rel (0) target = $region41
    $region40: #{tpu_custom_call.1} parent=1 // pred_region
      _
    $region41: #{tpu_custom_call.1} parent=1 // pred_fallthru
      _
    // Predicated region
    $region42: #{tpu_custom_call.1} parent=1 // pred_check
      _
    $region43: #{tpu_custom_call.1} parent=1 // pred_check_branch
      %48 = sbr.rel (0) target = $region45
    $region44: #{tpu_custom_call.1} parent=1 // pred_region
      %49 = dma.done [#allocation6], 8192
    $region45: #{tpu_custom_call.1} parent=1 // pred_fallthru
      _
    %v50 = vld [vmem:[%s1] sm:$0xff]
    %v51 = vld [vmem:[%s1 + $0x8] sm:$0xff]
    %v52 = vld [vmem:[%s1 + $0x10] sm:$0xff]
    %v53 = vld [vmem:[%s1 + $0x18] sm:$0xff]
    %v54 = vld [vmem:[%s2] sm:$0x1]
    %v55 = vld [vmem:[%s3] sm:$0x1]
    %v56 = vld [vmem:[%s4] sm:$0xff]
    %v57 = vld [vmem:[%s4 + $0x8] sm:$0xff]
    %v58 = vld [vmem:[%s4 + $0x10] sm:$0xff]
    %v59 = vld [vmem:[%s4 + $0x18] sm:$0xff]
    %v60 = vld [vmem:[%s4 + $0x20] sm:$0xff]
    %v61 = vld [vmem:[%s4 + $0x28] sm:$0xff]
    %v62 = vld [vmem:[%s4 + $0x30] sm:$0xff]
    %v63 = vld [vmem:[%s4 + $0x38] sm:$0xff]
    %v64 = vld [vmem:[%s4 + $0x40] sm:$0xff]
    %v65 = vld [vmem:[%s4 + $0x48] sm:$0xff]
    %v66 = vld [vmem:[%s4 + $0x50] sm:$0xff]
    %v67 = vld [vmem:[%s4 + $0x58] sm:$0xff]
    %v68 = vld [vmem:[%s4 + $0x60] sm:$0xff]
    %v69 = vld [vmem:[%s4 + $0x68] sm:$0xff]
    %v70 = vld [vmem:[%s4 + $0x70] sm:$0xff]
    %v71 = vld [vmem:[%s4 + $0x78] sm:$0xff]
    %v72 = vld [vmem:[%s4 + $0x80] sm:$0xff]
    %v73 = vld [vmem:[%s4 + $0x88] sm:$0xff]
    %v74 = vld [vmem:[%s4 + $0x90] sm:$0xff]
    %v75 = vld [vmem:[%s4 + $0x98] sm:$0xff]
    %v76 = vld [vmem:[%s4 + $0xa0] sm:$0xff]
    %v77 = vld [vmem:[%s4 + $0xa8] sm:$0xff]
    %v78 = vld [vmem:[%s4 + $0xb0] sm:$0xff]
    %v79 = vld [vmem:[%s4 + $0xb8] sm:$0xff]
    %v80 = vld [vmem:[%s4 + $0xc0] sm:$0xff]
    %v81 = vld [vmem:[%s4 + $0xc8] sm:$0xff]
    %v82 = vld [vmem:[%s4 + $0xd0] sm:$0xff]
    %v83 = vld [vmem:[%s4 + $0xd8] sm:$0xff]
    %v84 = vld [vmem:[%s4 + $0xe0] sm:$0xff]
    %v85 = vld [vmem:[%s4 + $0xe8] sm:$0xff]
    %v86 = vld [vmem:[%s4 + $0xf0] sm:$0xff]
    %v87 = vld [vmem:[%s4 + $0xf8] sm:$0xff]
    %v88 = vld [vmem:[%s5] sm:$0x1]
    %v89 = vld [vmem:[%s6] sm:$0x1]
    %v90 = vld [vmem:[#allocation5] sm:$0xff]
    %v91 = vld [vmem:[#allocation5 + $0x8] sm:$0xff]
    %v92 = vld [vmem:[#allocation5 + $0x10] sm:$0xff]
    %v93 = vld [vmem:[#allocation5 + $0x18] sm:$0xff]
    %v94 = vld [vmem:[#allocation5 + $0x20] sm:$0xff]
    %v95 = vld [vmem:[#allocation5 + $0x28] sm:$0xff]
    %v96 = vld [vmem:[#allocation5 + $0x30] sm:$0xff]
    %v97 = vld [vmem:[#allocation5 + $0x38] sm:$0xff]
    %v98 = vld [vmem:[#allocation5 + $0x40] sm:$0xff]
    %v99 = vld [vmem:[#allocation5 + $0x48] sm:$0xff]
    %v100 = vld [vmem:[#allocation5 + $0x50] sm:$0xff]
    %v101 = vld [vmem:[#allocation5 + $0x58] sm:$0xff]
    %v102 = vld [vmem:[#allocation5 + $0x60] sm:$0xff]
    %v103 = vld [vmem:[#allocation5 + $0x68] sm:$0xff]
    %v104 = vld [vmem:[#allocation5 + $0x70] sm:$0xff]
    %v105 = vld [vmem:[#allocation5 + $0x78] sm:$0xff]
    %v106 = vld [vmem:[#allocation5 + $0x80] sm:$0xff]
    %v107 = vld [vmem:[#allocation5 + $0x88] sm:$0xff]
    %v108 = vld [vmem:[#allocation5 + $0x90] sm:$0xff]
    %v109 = vld [vmem:[#allocation5 + $0x98] sm:$0xff]
    %v110 = vld [vmem:[#allocation5 + $0xa0] sm:$0xff]
    %v111 = vld [vmem:[#allocation5 + $0xa8] sm:$0xff]
    %v112 = vld [vmem:[#allocation5 + $0xb0] sm:$0xff]
    %v113 = vld [vmem:[#allocation5 + $0xb8] sm:$0xff]
    %v114 = vld [vmem:[#allocation5 + $0xc0] sm:$0xff]
    %v115 = vld [vmem:[#allocation5 + $0xc8] sm:$0xff]
    %v116 = vld [vmem:[#allocation5 + $0xd0] sm:$0xff]
    %v117 = vld [vmem:[#allocation5 + $0xd8] sm:$0xff]
    %v118 = vld [vmem:[#allocation5 + $0xe0] sm:$0xff]
    %v119 = vld [vmem:[#allocation5 + $0xe8] sm:$0xff]
    %v120 = vld [vmem:[#allocation5 + $0xf0] sm:$0xff]
    %v121 = vld [vmem:[#allocation5 + $0xf8] sm:$0xff]
    %v122 = vld [vmem:[#allocation5 + $0x100] sm:$0xff]
    %v123 = vld [vmem:[#allocation5 + $0x108] sm:$0xff]
    %v124 = vld [vmem:[#allocation5 + $0x110] sm:$0xff]
    %v125 = vld [vmem:[#allocation5 + $0x118] sm:$0xff]
    %v126 = vld [vmem:[#allocation5 + $0x120] sm:$0xff]
    %v127 = vld [vmem:[#allocation5 + $0x128] sm:$0xff]
    %v128 = vld [vmem:[#allocation5 + $0x130] sm:$0xff]
    %v129 = vld [vmem:[#allocation5 + $0x138] sm:$0xff]
    %v130 = vld [vmem:[#allocation5 + $0x140] sm:$0xff]
    %v131 = vld [vmem:[#allocation5 + $0x148] sm:$0xff]
    %v132 = vld [vmem:[#allocation5 + $0x150] sm:$0xff]
    %v133 = vld [vmem:[#allocation5 + $0x158] sm:$0xff]
    %v134 = vld [vmem:[#allocation5 + $0x160] sm:$0xff]
    %v135 = vld [vmem:[#allocation5 + $0x168] sm:$0xff]
    %v136 = vld [vmem:[#allocation5 + $0x170] sm:$0xff]
    %v137 = vld [vmem:[#allocation5 + $0x178] sm:$0xff]
    %v138 = vld [vmem:[#allocation5 + $0x180] sm:$0xff]
    %v139 = vld [vmem:[#allocation5 + $0x188] sm:$0xff]
    %v140 = vld [vmem:[#allocation5 + $0x190] sm:$0xff]
    %v141 = vld [vmem:[#allocation5 + $0x198] sm:$0xff]
    %v142 = vld [vmem:[#allocation5 + $0x1a0] sm:$0xff]
    %v143 = vld [vmem:[#allocation5 + $0x1a8] sm:$0xff]
    %v144 = vld [vmem:[#allocation5 + $0x1b0] sm:$0xff]
    %v145 = vld [vmem:[#allocation5 + $0x1b8] sm:$0xff]
    %v146 = vld [vmem:[#allocation5 + $0x1c0] sm:$0xff]
    %v147 = vld [vmem:[#allocation5 + $0x1c8] sm:$0xff]
    %v148 = vld [vmem:[#allocation5 + $0x1d0] sm:$0xff]
    %v149 = vld [vmem:[#allocation5 + $0x1d8] sm:$0xff]
    %v150 = vld [vmem:[#allocation5 + $0x1e0] sm:$0xff]
    %v151 = vld [vmem:[#allocation5 + $0x1e8] sm:$0xff]
    %v152 = vld [vmem:[#allocation5 + $0x1f0] sm:$0xff]
    %v153 = vld [vmem:[#allocation5 + $0x1f8] sm:$0xff]
    %v154 = vld [vmem:[%s8] sm:$0x1]
    %v155 = vld [vmem:[%s9] sm:$0x1]
    %v156 = vld [vmem:[%s0] sm:$0xff]
    %v157 = vld [vmem:[%s0 + $0x8] sm:$0xff]
    %vm160 = vcmask 1043456
    %v161 = vrot.slane %v156, 4
    %v162 = vrot.slane %v157, 4
    %v163 = vsel %vm160, %v161, %v162
    %v167 = vsel %vm160, 0.0, %v161
    %v168 = vsel %vm160, %v162, 0.0
    %vm171 = vcmask 1046528
    %v172 = vrot.slane %v167, 1
    %v173 = vrot.slane %v163, 1
    %v174 = vsel %vm171, %v172, %v173
    %v175 = vrot.slane %v168, 1
    %v176 = vsel %vm171, %v173, %v175
    %177 = vrot.lane.b32.xlu0 %v174, 4
    %v178 = vpop.permute.xlu0 %177
    %179 = vrot.lane.b32.xlu0 %v176, 4
    %v180 = vpop.permute.xlu0 %179
    %181 = vrot.lane.b32.xlu0 %v175, 4
    %v182 = vpop.permute.xlu0 %181
    %vm186 = vcmask 1045504
    %v187 = vrot.slane %v167, 2
    %v188 = vrot.slane %v163, 2
    %v189 = vsel %vm186, %v187, %v188
    %v190 = vrot.slane %v168, 2
    %v191 = vsel %vm186, %v188, %v190
    %192 = vrot.lane.b32.xlu0 %v189, 8
    %v193 = vpop.permute.xlu0 %192
    %194 = vrot.lane.b32.xlu0 %v191, 8
    %v195 = vpop.permute.xlu0 %194
    %196 = vrot.lane.b32.xlu0 %v190, 8
    %v197 = vpop.permute.xlu0 %196
    %vm201 = vcmask 1044480
    %v202 = vrot.slane %v167, 3
    %v203 = vrot.slane %v163, 3
    %v204 = vsel %vm201, %v202, %v203
    %v205 = vrot.slane %v168, 3
    %v206 = vsel %vm201, %v203, %v205
    %207 = vrot.lane.b32.xlu0 %v204, 12
    %v208 = vpop.permute.xlu0 %207
    %209 = vrot.lane.b32.xlu0 %v206, 12
    %v210 = vpop.permute.xlu0 %209
    %211 = vrot.lane.b32.xlu0 %v205, 12
    %v212 = vpop.permute.xlu0 %211
    %v216 = vrot.slane %v167, 4
    %v217 = vrot.slane %v163, 4
    %v218 = vsel %vm160, %v216, %v217
    %v219 = vrot.slane %v168, 4
    %v220 = vsel %vm160, %v217, %v219
    %221 = vrot.lane.b32.xlu0 %v218, 16
    %v222 = vpop.permute.xlu0 %221
    %223 = vrot.lane.b32.xlu0 %v220, 16
    %v224 = vpop.permute.xlu0 %223
    %225 = vrot.lane.b32.xlu0 %v219, 16
    %v226 = vpop.permute.xlu0 %225
    %vm230 = vcmask 1042432
    %v231 = vrot.slane %v167, 5
    %v232 = vrot.slane %v163, 5
    %v233 = vsel %vm230, %v231, %v232
    %v234 = vrot.slane %v168, 5
    %v235 = vsel %vm230, %v232, %v234
    %236 = vrot.lane.b32.xlu0 %v233, 20
    %v237 = vpop.permute.xlu0 %236
    %238 = vrot.lane.b32.xlu0 %v235, 20
    %v239 = vpop.permute.xlu0 %238
    %240 = vrot.lane.b32.xlu0 %v234, 20
    %v241 = vpop.permute.xlu0 %240
    %vm245 = vcmask 1041408
    %v246 = vrot.slane %v167, 6
    %v247 = vrot.slane %v163, 6
    %v248 = vsel %vm245, %v246, %v247
    %v249 = vrot.slane %v168, 6
    %v250 = vsel %vm245, %v247, %v249
    %251 = vrot.lane.b32.xlu0 %v248, 24
    %v252 = vpop.permute.xlu0 %251
    %253 = vrot.lane.b32.xlu0 %v250, 24
    %v254 = vpop.permute.xlu0 %253
    %255 = vrot.lane.b32.xlu0 %v249, 24
    %v256 = vpop.permute.xlu0 %255
    %vm260 = vcmask 1040384
    %v261 = vrot.slane %v167, 7
    %v262 = vrot.slane %v163, 7
    %v263 = vsel %vm260, %v261, %v262
    %v264 = vrot.slane %v168, 7
    %v265 = vsel %vm260, %v262, %v264
    %266 = vrot.lane.b32.xlu0 %v263, 28
    %v267 = vpop.permute.xlu0 %266
    %268 = vrot.lane.b32.xlu0 %v265, 28
    %v269 = vpop.permute.xlu0 %268
    %270 = vrot.lane.b32.xlu0 %v264, 28
    %v271 = vpop.permute.xlu0 %270
    %vm275 = vcmask 31744
    %v276 = vsel %vm275, %v167, %v178
    %v277 = vsel %vm275, %v163, %v180
    %v278 = vsel %vm275, %v168, %v182
    %vm279 = vcmask 64512
    %v280 = vsel %vm279, %v276, %v193
    %v281 = vsel %vm279, %v277, %v195
    %v282 = vsel %vm279, %v278, %v197
    %vm283 = vcmask 97280
    %v284 = vsel %vm283, %v280, %v208
    %v285 = vsel %vm283, %v281, %v210
    %v286 = vsel %vm283, %v282, %v212
    %vm287 = vcmask 130048
    %v288 = vsel %vm287, %v284, %v222
    %v289 = vsel %vm287, %v285, %v224
    %v290 = vsel %vm287, %v286, %v226
    %vm291 = vcmask 162816
    %v292 = vsel %vm291, %v288, %v237
    %v293 = vsel %vm291, %v289, %v239
    %v294 = vsel %vm291, %v290, %v241
    %vm295 = vcmask 195584
    %v296 = vsel %vm295, %v292, %v252
    %v297 = vsel %vm295, %v293, %v254
    %v298 = vsel %vm295, %v294, %v256
    %vm299 = vcmask 228352
    %v300 = vsel %vm299, %v296, %v267
    %v301 = vsel %vm299, %v297, %v269
    %v302 = vsel %vm299, %v298, %v271
    %vm303 = vcmask 261120
    %v305 = vsel %vm303, %v300, 0
    %v308 = vsel %vm303, %v301, 0
    %v311 = vsel %vm303, %v302, 0
    %313 = vmatprep.subr.mxu0 0.0
    %314 = vmatpush1.msra.mxu0 %v50
    %315 = vmatprep.subr.mxu0 0.0
    %316 = vmatpush1.msra.mxu0 %v51
    %317 = vmatprep.subr.mxu0 0.0
    %318 = vmatpush1.msra.mxu0 %v52
    %319 = vmatprep.subr.mxu0 0.0
    %320 = vmatpush1.msra.mxu0 %v53
    %321 = vmatprep.subr.mxu0 0.0
    %322 = vmatpush1.msra.mxu0 0.0
    %323 = vmatprep.subr.mxu0 0.0
    %324 = vmatpush1.msra.mxu0 0.0
    %325 = vmatprep.subr.mxu0 0.0
    %326 = vmatpush1.msra.mxu0 0.0
    %327 = vmatprep.subr.mxu0 0.0
    %328 = vmatpush1.msra.mxu0 0.0
    %329 = vmatprep.subr.mxu0 0.0
    %330 = vmatpush1.msra.mxu0 0.0
    %331 = vmatprep.subr.mxu0 0.0
    %332 = vmatpush1.msra.mxu0 0.0
    %333 = vmatprep.subr.mxu0 0.0
    %334 = vmatpush1.msra.mxu0 0.0
    %335 = vmatprep.subr.mxu0 0.0
    %336 = vmatpush1.msra.mxu0 0.0
    %337 = vmatprep.subr.mxu0 0.0
    %338 = vmatpush1.msra.mxu0 0.0
    %339 = vmatprep.subr.mxu0 0.0
    %340 = vmatpush1.msra.mxu0 0.0
    %341 = vmatprep.subr.mxu0 0.0
    %342 = vmatpush1.msra.mxu0 0.0
    %343 = vmatprep.subr.mxu0 0.0
    %344 = vmatpush1.msra.mxu0 0.0
    %345 = vmatprep.subr.mxu0 0.0
    %346 = vmatpush1.msra.mxu0 0.0
    %347 = vmatprep.subr.mxu0 0.0
    %348 = vmatpush1.msra.mxu0 0.0
    %349 = vmatprep.subr.mxu0 0.0
    %350 = vmatpush1.msra.mxu0 0.0
    %351 = vmatprep.subr.mxu0 0.0
    %352 = vmatpush1.msra.mxu0 0.0
    %353 = vmatprep.subr.mxu0 0.0
    %354 = vmatpush1.msra.mxu0 0.0
    %355 = vmatprep.subr.mxu0 0.0
    %356 = vmatpush1.msra.mxu0 0.0
    %357 = vmatprep.subr.mxu0 0.0
    %358 = vmatpush1.msra.mxu0 0.0
    %359 = vmatprep.subr.mxu0 0.0
    %360 = vmatpush1.msra.mxu0 0.0
    %361 = vmatprep.subr.mxu0 0.0
    %362 = vmatpush1.msra.mxu0 0.0
    %363 = vmatprep.subr.mxu0 0.0
    %364 = vmatpush1.msra.mxu0 0.0
    %365 = vmatprep.subr.mxu0 0.0
    %366 = vmatpush1.msra.mxu0 0.0
    %367 = vmatprep.subr.mxu0 0.0
    %368 = vmatpush1.msra.mxu0 0.0
    %369 = vmatprep.subr.mxu0 0.0
    %370 = vmatpush1.msra.mxu0 0.0
    %371 = vmatprep.subr.mxu0 0.0
    %372 = vmatpush1.msra.mxu0 0.0
    %373 = vmatprep.subr.mxu0 0.0
    %374 = vmatpush1.msra.mxu0 0.0
    %375 = vmatprep.subr.mxu0 0.0
    %376 = vmatpush1.msra.mxu0 0.0
    %377 = vmatprep.mubr.f32.mxu0 0.0
    %378 = vmatmul.mubr.f32.gmra.mrb[0].mxu0 %v305
    %v379 = vpop.f32.mrb[0].mxu0
    %v380 = vadd.f32 0.0, %v379
    %v381 = vpop.f32.mrb[0].mxu0
    %382 = vmatprep.mubr.f32.mxu0 0.0
    %383 = vmatmul.mubr.f32.gmra.mrb[0].mxu0 %v308
    %v384 = vpop.f32.mrb[0].mxu0
    %v385 = vadd.f32 0.0, %v384
    %v386 = vpop.f32.mrb[0].mxu0
    %387 = vmatprep.mubr.f32.mxu0 0.0
    %388 = vmatmul.mubr.f32.gmra.mrb[0].mxu0 %v311
    %v389 = vpop.f32.mrb[0].mxu0
    %v390 = vadd.f32 0.0, %v389
    %v391 = vpop.f32.mrb[0].mxu0
    %392 = vdwg.mxu0
    %v394 = vlaneseq
    %v395 = vshrl.u32 %v394, 7
    %v396 = vsub.s32 0, %v395
    %v397 = vrot.slane %v54, %v396
    %v399 = vmul.f32 %v380, %v397
    %v400 = vmul.f32 %v385, %v397
    %v401 = vmul.f32 %v390, %v397
    %v403 = vlaneseq
    %v404 = vshrl.u32 %v403, 7
    %v405 = vsub.s32 0, %v404
    %v406 = vrot.slane %v55, %v405
    %v408 = vadd.f32 %v399, %v406
    %v409 = vadd.f32 %v400, %v406
    %v410 = vadd.f32 %v401, %v406
    %v411 = vmax.f32 %v408, 0.0
    %v412 = vmax.f32 %v409, 0.0
    %v413 = vmax.f32 %v410, 0.0
    %v414 = vsel %vm303, %v411, 0.0
    %v415 = vsel %vm303, %v412, 0.0
    %v416 = vsel %vm303, %v413, 0.0
    %v420 = vrot.slane %v414, 7
    %v421 = vrot.slane %v415, 7
    %v422 = vsel %vm260, %v420, %v421
    %v423 = vrot.slane %v416, 7
    %v424 = vsel %vm260, %v421, %v423
    %v428 = vsel %vm260, -inf, %v420
    %429 = vst [vmem:[#allocation2] sm:$0xff] %v428
    %430 = vst [vmem:[#allocation2 + $0x8] sm:$0xff] %v422
    %431 = vst [vmem:[#allocation2 + $0x10] sm:$0x3] %v424
    %v432 = vld [vmem:[#allocation2] ss:$2 sm:$0xff]
    %s433 = scalar_lea.vmem [#allocation2], 16
    %v434 = vld [vmem:[%s433] ss:$2 sm:$0x1]
    %s435 = scalar_lea.vmem [#allocation2], 1
    %v436 = vld [vmem:[%s435] ss:$2 sm:$0xff]
    %s437 = scalar_lea.vmem [#allocation2], 17
    %v438 = vld [vmem:[%s437] ss:$2 sm:$0x1]
    %v439 = vmax.f32 %v432, %v436
    %v440 = vmax.f32 %v434, %v438
    %v443 = vrot.slane %v439, 4
    %v444 = vrot.slane %v440, 4
    %v445 = vsel %vm160, %v443, %v444
    %v448 = vsel %vm160, 0.0, %v443
    %v449 = vsel %vm201, %v445, 0.0
    %v452 = vrot.slane %v448, 1
    %v453 = vrot.slane %v449, 1
    %v454 = vsel %vm171, %v452, %v453
    %455 = vrot.lane.b32.xlu0 %v454, 32
    %v456 = vpop.permute.xlu0 %455
    %457 = vrot.lane.b32.xlu0 %v453, 32
    %v458 = vpop.permute.xlu0 %457
    %v461 = vrot.slane %v448, 2
    %v462 = vrot.slane %v449, 2
    %v463 = vsel %vm186, %v461, %v462
    %464 = vrot.lane.b32.xlu0 %v463, 64
    %v465 = vpop.permute.xlu0 %464
    %466 = vrot.lane.b32.xlu0 %v462, 64
    %v467 = vpop.permute.xlu0 %466
    %v470 = vrot.slane %v448, 3
    %v471 = vrot.slane %v449, 3
    %v472 = vsel %vm201, %v470, %v471
    %473 = vrot.lane.b32.xlu0 %v472, 96
    %v474 = vpop.permute.xlu0 %473
    %475 = vrot.lane.b32.xlu0 %v471, 96
    %v476 = vpop.permute.xlu0 %475
    %v479 = vrot.slane %v448, 4
    %v480 = vrot.slane %v449, 4
    %v481 = vsel %vm160, %v479, %v480
    %v484 = vrot.slane %v448, 5
    %v485 = vrot.slane %v449, 5
    %v486 = vsel %vm230, %v484, %v485
    %487 = vrot.lane.b32.xlu0 %v486, 32
    %v488 = vpop.permute.xlu0 %487
    %489 = vrot.lane.b32.xlu0 %v485, 32
    %v490 = vpop.permute.xlu0 %489
    %v493 = vrot.slane %v448, 6
    %v494 = vrot.slane %v449, 6
    %v495 = vsel %vm245, %v493, %v494
    %496 = vrot.lane.b32.xlu0 %v495, 64
    %v497 = vpop.permute.xlu0 %496
    %498 = vrot.lane.b32.xlu0 %v494, 64
    %v499 = vpop.permute.xlu0 %498
    %v503 = vrot.slane %v448, 7
    %v504 = vrot.slane %v449, 7
    %v505 = vsel %vm260, %v503, %v504
    %v506 = vrot.slane 0.0, 7
    %v507 = vsel %vm260, %v504, %v506
    %508 = vrot.lane.b32.xlu0 %v505, 96
    %v509 = vpop.permute.xlu0 %508
    %510 = vrot.lane.b32.xlu0 %v507, 96
    %v511 = vpop.permute.xlu0 %510
    %v514 = vsel %vm303, %v448, %v456
    %v515 = vsel %vm303, %v449, %v458
    %vm516 = vcmask 523264
    %v517 = vsel %vm516, %v514, %v465
    %v518 = vsel %vm516, %v515, %v467
    %vm519 = vcmask 785408
    %v520 = vsel %vm519, %v517, %v474
    %v521 = vsel %vm519, %v518, %v476
    %v522 = vsel %vm303, %v481, %v488
    %v523 = vsel %vm303, %v480, %v490
    %v524 = vsel %vm516, %v522, %v497
    %v525 = vsel %vm516, %v523, %v499
    %v526 = vsel %vm519, %v524, %v509
    %v527 = vsel %vm519, %v525, %v511
    %528 = vmatprep.subr.mxu0 0.0
    %529 = vmatpush1.msra.mxu0 %v56
    %530 = vmatprep.subr.mxu0 0.0
    %531 = vmatpush1.msra.mxu0 %v57
    %532 = vmatprep.subr.mxu0 0.0
    %533 = vmatpush1.msra.mxu0 %v58
    %534 = vmatprep.subr.mxu0 0.0
    %535 = vmatpush1.msra.mxu0 %v59
    %536 = vmatprep.subr.mxu0 0.0
    %537 = vmatpush1.msra.mxu0 %v60
    %538 = vmatprep.subr.mxu0 0.0
    %539 = vmatpush1.msra.mxu0 %v61
    %540 = vmatprep.subr.mxu0 0.0
    %541 = vmatpush1.msra.mxu0 %v62
    %542 = vmatprep.subr.mxu0 0.0
    %543 = vmatpush1.msra.mxu0 %v63
    %544 = vmatprep.subr.mxu0 0.0
    %545 = vmatpush1.msra.mxu0 %v64
    %546 = vmatprep.subr.mxu0 0.0
    %547 = vmatpush1.msra.mxu0 %v65
    %548 = vmatprep.subr.mxu0 0.0
    %549 = vmatpush1.msra.mxu0 %v66
    %550 = vmatprep.subr.mxu0 0.0
    %551 = vmatpush1.msra.mxu0 %v67
    %552 = vmatprep.subr.mxu0 0.0
    %553 = vmatpush1.msra.mxu0 %v68
    %554 = vmatprep.subr.mxu0 0.0
    %555 = vmatpush1.msra.mxu0 %v69
    %556 = vmatprep.subr.mxu0 0.0
    %557 = vmatpush1.msra.mxu0 %v70
    %558 = vmatprep.subr.mxu0 0.0
    %559 = vmatpush1.msra.mxu0 %v71
    %560 = vmatprep.subr.mxu0 0.0
    %561 = vmatpush1.msra.mxu0 %v72
    %562 = vmatprep.subr.mxu0 0.0
    %563 = vmatpush1.msra.mxu0 %v73
    %564 = vmatprep.subr.mxu0 0.0
    %565 = vmatpush1.msra.mxu0 %v74
    %566 = vmatprep.subr.mxu0 0.0
    %567 = vmatpush1.msra.mxu0 %v75
    %568 = vmatprep.subr.mxu0 0.0
    %569 = vmatpush1.msra.mxu0 %v76
    %570 = vmatprep.subr.mxu0 0.0
    %571 = vmatpush1.msra.mxu0 %v77
    %572 = vmatprep.subr.mxu0 0.0
    %573 = vmatpush1.msra.mxu0 %v78
    %574 = vmatprep.subr.mxu0 0.0
    %575 = vmatpush1.msra.mxu0 %v79
    %576 = vmatprep.subr.mxu0 0.0
    %577 = vmatpush1.msra.mxu0 %v80
    %578 = vmatprep.subr.mxu0 0.0
    %579 = vmatpush1.msra.mxu0 %v81
    %580 = vmatprep.subr.mxu0 0.0
    %581 = vmatpush1.msra.mxu0 %v82
    %582 = vmatprep.subr.mxu0 0.0
    %583 = vmatpush1.msra.mxu0 %v83
    %584 = vmatprep.subr.mxu0 0.0
    %585 = vmatpush1.msra.mxu0 %v84
    %586 = vmatprep.subr.mxu0 0.0
    %587 = vmatpush1.msra.mxu0 %v85
    %588 = vmatprep.subr.mxu0 0.0
    %589 = vmatpush1.msra.mxu0 %v86
    %590 = vmatprep.subr.mxu0 0.0
    %591 = vmatpush1.msra.mxu0 %v87
    %592 = vmatprep.mubr.f32.mxu0 %v526
    %593 = vmatmul.mubr.f32.gmra.mrb[0].mxu0 %v520
    %v594 = vpop.f32.mrb[0].mxu0
    %v595 = vadd.f32 0.0, %v594
    %v596 = vpop.f32.mrb[0].mxu0
    %597 = vmatprep.mubr.f32.mxu0 %v527
    %598 = vmatmul.mubr.f32.gmra.mrb[0].mxu0 %v521
    %v599 = vpop.f32.mrb[0].mxu0
    %v600 = vadd.f32 0.0, %v599
    %v601 = vpop.f32.mrb[0].mxu0
    %602 = vdwg.mxu0
    %v604 = vlaneseq
    %v605 = vshrl.u32 %v604, 7
    %v606 = vsub.s32 0, %v605
    %v607 = vrot.slane %v88, %v606
    %v609 = vmul.f32 %v595, %v607
    %v610 = vmul.f32 %v600, %v607
    %v612 = vlaneseq
    %v613 = vshrl.u32 %v612, 7
    %v614 = vsub.s32 0, %v613
    %v615 = vrot.slane %v89, %v614
    %v617 = vadd.f32 %v609, %v615
    %v618 = vadd.f32 %v610, %v615
    %v619 = vmax.f32 %v617, 0.0
    %v620 = vmax.f32 %v618, 0.0
    %v621 = vsel %vm516, %v619, 0.0
    %v622 = vsel %vm516, %v620, 0.0
    %v625 = vrot.slane %v621, 7
    %v626 = vrot.slane %v622, 7
    %v627 = vsel %vm260, %v625, %v626
    %v630 = vsel %vm260, -inf, %v625
    %v631 = vsel %vm230, %v627, -inf
    %632 = vst [vmem:[#allocation3] sm:$0xff] %v630
    %633 = vst [vmem:[#allocation3 + $0x8] sm:$0xf] %v631
    %v634 = vld [vmem:[#allocation3] ss:$2 sm:$0x3f]
    %s635 = scalar_lea.vmem [#allocation3], 1
    %v636 = vld [vmem:[%s635] ss:$2 sm:$0x3f]
    %v637 = vmax.f32 %v634, %v636
    %v639 = vrot.slane %v637, 4
    %v641 = vsel %vm160, 0.0, %v639
    %v642 = vsel %vm245, %v639, 0.0
    %v644 = vrot.slane %v641, 1
    %645 = vrot.lane.b32.xlu0 %v644, 64
    %v646 = vpop.permute.xlu0 %645
    %v649 = vrot.slane %v641, 2
    %v650 = vrot.slane %v642, 2
    %v651 = vsel %vm186, %v649, %v650
    %v653 = vrot.slane %v641, 3
    %v654 = vrot.slane %v642, 3
    %v655 = vsel %vm201, %v653, %v654
    %656 = vrot.lane.b32.xlu0 %v655, 64
    %v657 = vpop.permute.xlu0 %656
    %v659 = vrot.slane %v641, 4
    %v660 = vrot.slane %v642, 4
    %v661 = vsel %vm160, %v659, %v660
    %v663 = vrot.slane %v641, 5
    %v664 = vrot.slane %v642, 5
    %v665 = vsel %vm230, %v663, %v664
    %666 = vrot.lane.b32.xlu0 %v665, 64
    %v667 = vpop.permute.xlu0 %666
    %v669 = vrot.slane %v641, 6
    %v670 = vrot.slane %v642, 6
    %v671 = vsel %vm245, %v669, %v670
    %v673 = vrot.slane %v641, 7
    %v674 = vrot.slane %v642, 7
    %v675 = vsel %vm260, %v673, %v674
    %676 = vrot.lane.b32.xlu0 %v675, 64
    %v677 = vpop.permute.xlu0 %676
    %v679 = vsel %vm516, %v641, %v646
    %v680 = vsel %vm516, %v651, %v657
    %v681 = vsel %vm516, %v661, %v667
    %v682 = vsel %vm516, %v671, %v677
    %683 = vmatprep.subr.mxu0 0.0
    %684 = vmatpush1.msra.mxu0 %v90
    %685 = vmatprep.subr.mxu0 0.0
    %686 = vmatpush1.msra.mxu0 %v91
    %687 = vmatprep.subr.mxu0 0.0
    %688 = vmatpush1.msra.mxu0 %v92
    %689 = vmatprep.subr.mxu0 0.0
    %690 = vmatpush1.msra.mxu0 %v93
    %691 = vmatprep.subr.mxu0 0.0
    %692 = vmatpush1.msra.mxu0 %v94
    %693 = vmatprep.subr.mxu0 0.0
    %694 = vmatpush1.msra.mxu0 %v95
    %695 = vmatprep.subr.mxu0 0.0
    %696 = vmatpush1.msra.mxu0 %v96
    %697 = vmatprep.subr.mxu0 0.0
    %698 = vmatpush1.msra.mxu0 %v97
    %699 = vmatprep.subr.mxu0 0.0
    %700 = vmatpush1.msra.mxu0 %v98
    %701 = vmatprep.subr.mxu0 0.0
    %702 = vmatpush1.msra.mxu0 %v99
    %703 = vmatprep.subr.mxu0 0.0
    %704 = vmatpush1.msra.mxu0 %v100
    %705 = vmatprep.subr.mxu0 0.0
    %706 = vmatpush1.msra.mxu0 %v101
    %707 = vmatprep.subr.mxu0 0.0
    %708 = vmatpush1.msra.mxu0 %v102
    %709 = vmatprep.subr.mxu0 0.0
    %710 = vmatpush1.msra.mxu0 %v103
    %711 = vmatprep.subr.mxu0 0.0
    %712 = vmatpush1.msra.mxu0 %v104
    %713 = vmatprep.subr.mxu0 0.0
    %714 = vmatpush1.msra.mxu0 %v105
    %715 = vmatprep.subr.mxu0 0.0
    %716 = vmatpush1.msra.mxu0 %v106
    %717 = vmatprep.subr.mxu0 0.0
    %718 = vmatpush1.msra.mxu0 %v107
    %719 = vmatprep.subr.mxu0 0.0
    %720 = vmatpush1.msra.mxu0 %v108
    %721 = vmatprep.subr.mxu0 0.0
    %722 = vmatpush1.msra.mxu0 %v109
    %723 = vmatprep.subr.mxu0 0.0
    %724 = vmatpush1.msra.mxu0 %v110
    %725 = vmatprep.subr.mxu0 0.0
    %726 = vmatpush1.msra.mxu0 %v111
    %727 = vmatprep.subr.mxu0 0.0
    %728 = vmatpush1.msra.mxu0 %v112
    %729 = vmatprep.subr.mxu0 0.0
    %730 = vmatpush1.msra.mxu0 %v113
    %731 = vmatprep.subr.mxu0 0.0
    %732 = vmatpush1.msra.mxu0 %v114
    %733 = vmatprep.subr.mxu0 0.0
    %734 = vmatpush1.msra.mxu0 %v115
    %735 = vmatprep.subr.mxu0 0.0
    %736 = vmatpush1.msra.mxu0 %v116
    %737 = vmatprep.subr.mxu0 0.0
    %738 = vmatpush1.msra.mxu0 %v117
    %739 = vmatprep.subr.mxu0 0.0
    %740 = vmatpush1.msra.mxu0 %v118
    %741 = vmatprep.subr.mxu0 0.0
    %742 = vmatpush1.msra.mxu0 %v119
    %743 = vmatprep.subr.mxu0 0.0
    %744 = vmatpush1.msra.mxu0 %v120
    %745 = vmatprep.subr.mxu0 0.0
    %746 = vmatpush1.msra.mxu0 %v121
    %747 = vmatprep.mubr.f32.mxu0 %v680
    %748 = vmatmul.mubr.f32.gmra.mrb[0].mxu0 %v679
    %v749 = vpop.f32.mrb[0].mxu0
    %v750 = vadd.f32 0.0, %v749
    %v751 = vpop.f32.mrb[0].mxu0
    %752 = vdwg.mxu0
    %753 = vmatprep.subr.mxu0 0.0
    %754 = vmatpush1.msra.mxu0 %v122
    %755 = vmatprep.subr.mxu0 0.0
    %756 = vmatpush1.msra.mxu0 %v123
    %757 = vmatprep.subr.mxu0 0.0
    %758 = vmatpush1.msra.mxu0 %v124
    %759 = vmatprep.subr.mxu0 0.0
    %760 = vmatpush1.msra.mxu0 %v125
    %761 = vmatprep.subr.mxu0 0.0
    %762 = vmatpush1.msra.mxu0 %v126
    %763 = vmatprep.subr.mxu0 0.0
    %764 = vmatpush1.msra.mxu0 %v127
    %765 = vmatprep.subr.mxu0 0.0
    %766 = vmatpush1.msra.mxu0 %v128
    %767 = vmatprep.subr.mxu0 0.0
    %768 = vmatpush1.msra.mxu0 %v129
    %769 = vmatprep.subr.mxu0 0.0
    %770 = vmatpush1.msra.mxu0 %v130
    %771 = vmatprep.subr.mxu0 0.0
    %772 = vmatpush1.msra.mxu0 %v131
    %773 = vmatprep.subr.mxu0 0.0
    %774 = vmatpush1.msra.mxu0 %v132
    %775 = vmatprep.subr.mxu0 0.0
    %776 = vmatpush1.msra.mxu0 %v133
    %777 = vmatprep.subr.mxu0 0.0
    %778 = vmatpush1.msra.mxu0 %v134
    %779 = vmatprep.subr.mxu0 0.0
    %780 = vmatpush1.msra.mxu0 %v135
    %781 = vmatprep.subr.mxu0 0.0
    %782 = vmatpush1.msra.mxu0 %v136
    %783 = vmatprep.subr.mxu0 0.0
    %784 = vmatpush1.msra.mxu0 %v137
    %785 = vmatprep.subr.mxu0 0.0
    %786 = vmatpush1.msra.mxu0 %v138
    %787 = vmatprep.subr.mxu0 0.0
    %788 = vmatpush1.msra.mxu0 %v139
    %789 = vmatprep.subr.mxu0 0.0
    %790 = vmatpush1.msra.mxu0 %v140
    %791 = vmatprep.subr.mxu0 0.0
    %792 = vmatpush1.msra.mxu0 %v141
    %793 = vmatprep.subr.mxu0 0.0
    %794 = vmatpush1.msra.mxu0 %v142
    %795 = vmatprep.subr.mxu0 0.0
    %796 = vmatpush1.msra.mxu0 %v143
    %797 = vmatprep.subr.mxu0 0.0
    %798 = vmatpush1.msra.mxu0 %v144
    %799 = vmatprep.subr.mxu0 0.0
    %800 = vmatpush1.msra.mxu0 %v145
    %801 = vmatprep.subr.mxu0 0.0
    %802 = vmatpush1.msra.mxu0 %v146
    %803 = vmatprep.subr.mxu0 0.0
    %804 = vmatpush1.msra.mxu0 %v147
    %805 = vmatprep.subr.mxu0 0.0
    %806 = vmatpush1.msra.mxu0 %v148
    %807 = vmatprep.subr.mxu0 0.0
    %808 = vmatpush1.msra.mxu0 %v149
    %809 = vmatprep.subr.mxu0 0.0
    %810 = vmatpush1.msra.mxu0 %v150
    %811 = vmatprep.subr.mxu0 0.0
    %812 = vmatpush1.msra.mxu0 %v151
    %813 = vmatprep.subr.mxu0 0.0
    %814 = vmatpush1.msra.mxu0 %v152
    %815 = vmatprep.subr.mxu0 0.0
    %816 = vmatpush1.msra.mxu0 %v153
    %817 = vmatprep.mubr.f32.mxu0 %v682
    %818 = vmatmul.mubr.f32.gmra.mrb[0].mxu0 %v681
    %v819 = vpop.f32.mrb[0].mxu0
    %v820 = vadd.f32 %v750, %v819
    %v821 = vpop.f32.mrb[0].mxu0
    %822 = vdwg.mxu0
    %v824 = vlaneseq
    %v825 = vshrl.u32 %v824, 7
    %v826 = vsub.s32 0, %v825
    %v827 = vrot.slane %v154, %v826
    %v829 = vmul.f32 %v820, %v827
    %v831 = vlaneseq
    %v832 = vshrl.u32 %v831, 7
    %v833 = vsub.s32 0, %v832
    %v834 = vrot.slane %v155, %v833
    %v836 = vadd.f32 %v829, %v834
    %v837 = vmax.f32 %v836, 0.0
    %v839 = vrot.slane %v837, 7
    %v841 = vsel %vm260, -inf, %v839
    %842 = vst [vmem:[#allocation4] sm:$0xff] %v841
    %v843 = vld [vmem:[#allocation4] ss:$2 sm:$0xf]
    %s844 = scalar_lea.vmem [#allocation4], 1
    %v845 = vld [vmem:[%s844] ss:$2 sm:$0xf]
    %v846 = vmax.f32 %v843, %v845
    %847 = vst [vmem:[#allocation8] sm:$0xf] %v846
    %s848 = scalar_lea.vmem %s0, 16
    %v849 = vld [vmem:[%s848] sm:$0xff]
    %v850 = vld [vmem:[%s848 + $0x8] sm:$0xff]
    %v853 = vrot.slane %v849, 4
    %v854 = vrot.slane %v850, 4
    %v855 = vsel %vm160, %v853, %v854
    %v859 = vsel %vm160, 0.0, %v853
    %v860 = vsel %vm160, %v854, 0.0
    %v863 = vrot.slane %v859, 1
    %v864 = vrot.slane %v855, 1
    %v865 = vsel %vm171, %v863, %v864
    %v866 = vrot.slane %v860, 1
    %v867 = vsel %vm171, %v864, %v866
    %868 = vrot.lane.b32.xlu0 %v865, 4
    %v869 = vpop.permute.xlu0 %868
    %870 = vrot.lane.b32.xlu0 %v867, 4
    %v871 = vpop.permute.xlu0 %870
    %872 = vrot.lane.b32.xlu0 %v866, 4
    %v873 = vpop.permute.xlu0 %872
    %v877 = vrot.slane %v859, 2
    %v878 = vrot.slane %v855, 2
    %v879 = vsel %vm186, %v877, %v878
    %v880 = vrot.slane %v860, 2
    %v881 = vsel %vm186, %v878, %v880
    %882 = vrot.lane.b32.xlu0 %v879, 8
    %v883 = vpop.permute.xlu0 %882
    %884 = vrot.lane.b32.xlu0 %v881, 8
    %v885 = vpop.permute.xlu0 %884
    %886 = vrot.lane.b32.xlu0 %v880, 8
    %v887 = vpop.permute.xlu0 %886
    %v891 = vrot.slane %v859, 3
    %v892 = vrot.slane %v855, 3
    %v893 = vsel %vm201, %v891, %v892
    %v894 = vrot.slane %v860, 3
    %v895 = vsel %vm201, %v892, %v894
    %896 = vrot.lane.b32.xlu0 %v893, 12
    %v897 = vpop.permute.xlu0 %896
    %898 = vrot.lane.b32.xlu0 %v895, 12
    %v899 = vpop.permute.xlu0 %898
    %900 = vrot.lane.b32.xlu0 %v894, 12
    %v901 = vpop.permute.xlu0 %900
    %v905 = vrot.slane %v859, 4
    %v906 = vrot.slane %v855, 4
    %v907 = vsel %vm160, %v905, %v906
    %v908 = vrot.slane %v860, 4
    %v909 = vsel %vm160, %v906, %v908
    %910 = vrot.lane.b32.xlu0 %v907, 16
    %v911 = vpop.permute.xlu0 %910
    %912 = vrot.lane.b32.xlu0 %v909, 16
    %v913 = vpop.permute.xlu0 %912
    %914 = vrot.lane.b32.xlu0 %v908, 16
    %v915 = vpop.permute.xlu0 %914
    %v919 = vrot.slane %v859, 5
    %v920 = vrot.slane %v855, 5
    %v921 = vsel %vm230, %v919, %v920
    %v922 = vrot.slane %v860, 5
    %v923 = vsel %vm230, %v920, %v922
    %924 = vrot.lane.b32.xlu0 %v921, 20
    %v925 = vpop.permute.xlu0 %924
    %926 = vrot.lane.b32.xlu0 %v923, 20
    %v927 = vpop.permute.xlu0 %926
    %928 = vrot.lane.b32.xlu0 %v922, 20
    %v929 = vpop.permute.xlu0 %928
    %v933 = vrot.slane %v859, 6
    %v934 = vrot.slane %v855, 6
    %v935 = vsel %vm245, %v933, %v934
    %v936 = vrot.slane %v860, 6
    %v937 = vsel %vm245, %v934, %v936
    %938 = vrot.lane.b32.xlu0 %v935, 24
    %v939 = vpop.permute.xlu0 %938
    %940 = vrot.lane.b32.xlu0 %v937, 24
    %v941 = vpop.permute.xlu0 %940
    %942 = vrot.lane.b32.xlu0 %v936, 24
    %v943 = vpop.permute.xlu0 %942
    %v947 = vrot.slane %v859, 7
    %v948 = vrot.slane %v855, 7
    %v949 = vsel %vm260, %v947, %v948
    %v950 = vrot.slane %v860, 7
    %v951 = vsel %vm260, %v948, %v950
    %952 = vrot.lane.b32.xlu0 %v949, 28
    %v953 = vpop.permute.xlu0 %952
    %954 = vrot.lane.b32.xlu0 %v951, 28
    %v955 = vpop.permute.xlu0 %954
    %956 = vrot.lane.b32.xlu0 %v950, 28
    %v957 = vpop.permute.xlu0 %956
    %v961 = vsel %vm275, %v859, %v869
    %v962 = vsel %vm275, %v855, %v871
    %v963 = vsel %vm275, %v860, %v873
    %v964 = vsel %vm279, %v961, %v883
    %v965 = vsel %vm279, %v962, %v885
    %v966 = vsel %vm279, %v963, %v887
    %v967 = vsel %vm283, %v964, %v897
    %v968 = vsel %vm283, %v965, %v899
    %v969 = vsel %vm283, %v966, %v901
    %v970 = vsel %vm287, %v967, %v911
    %v971 = vsel %vm287, %v968, %v913
    %v972 = vsel %vm287, %v969, %v915
    %v973 = vsel %vm291, %v970, %v925
    %v974 = vsel %vm291, %v971, %v927
    %v975 = vsel %vm291, %v972, %v929
    %v976 = vsel %vm295, %v973, %v939
    %v977 = vsel %vm295, %v974, %v941
    %v978 = vsel %vm295, %v975, %v943
    %v979 = vsel %vm299, %v976, %v953
    %v980 = vsel %vm299, %v977, %v955
    %v981 = vsel %vm299, %v978, %v957
    %v983 = vsel %vm303, %v979, 0
    %v986 = vsel %vm303, %v980, 0
    %v989 = vsel %vm303, %v981, 0
    %991 = vmatprep.subr.mxu0 0.0
    %992 = vmatpush1.msra.mxu0 %v50
    %993 = vmatprep.subr.mxu0 0.0
    %994 = vmatpush1.msra.mxu0 %v51
    %995 = vmatprep.subr.mxu0 0.0
    %996 = vmatpush1.msra.mxu0 %v52
    %997 = vmatprep.subr.mxu0 0.0
    %998 = vmatpush1.msra.mxu0 %v53
    %999 = vmatprep.subr.mxu0 0.0
    %1000 = vmatpush1.msra.mxu0 0.0
    %1001 = vmatprep.subr.mxu0 0.0
    %1002 = vmatpush1.msra.mxu0 0.0
    %1003 = vmatprep.subr.mxu0 0.0
    %1004 = vmatpush1.msra.mxu0 0.0
    %1005 = vmatprep.subr.mxu0 0.0
    %1006 = vmatpush1.msra.mxu0 0.0
    %1007 = vmatprep.subr.mxu0 0.0
    %1008 = vmatpush1.msra.mxu0 0.0
    %1009 = vmatprep.subr.mxu0 0.0
    %1010 = vmatpush1.msra.mxu0 0.0
    %1011 = vmatprep.subr.mxu0 0.0
    %1012 = vmatpush1.msra.mxu0 0.0
    %1013 = vmatprep.subr.mxu0 0.0
    %1014 = vmatpush1.msra.mxu0 0.0
    %1015 = vmatprep.subr.mxu0 0.0
    %1016 = vmatpush1.msra.mxu0 0.0
    %1017 = vmatprep.subr.mxu0 0.0
    %1018 = vmatpush1.msra.mxu0 0.0
    %1019 = vmatprep.subr.mxu0 0.0
    %1020 = vmatpush1.msra.mxu0 0.0
    %1021 = vmatprep.subr.mxu0 0.0
    %1022 = vmatpush1.msra.mxu0 0.0
    %1023 = vmatprep.subr.mxu0 0.0
    %1024 = vmatpush1.msra.mxu0 0.0
    %1025 = vmatprep.subr.mxu0 0.0
    %1026 = vmatpush1.msra.mxu0 0.0
    %1027 = vmatprep.subr.mxu0 0.0
    %1028 = vmatpush1.msra.mxu0 0.0
    %1029 = vmatprep.subr.mxu0 0.0
    %1030 = vmatpush1.msra.mxu0 0.0
    %1031 = vmatprep.subr.mxu0 0.0
    %1032 = vmatpush1.msra.mxu0 0.0
    %1033 = vmatprep.subr.mxu0 0.0
    %1034 = vmatpush1.msra.mxu0 0.0
    %1035 = vmatprep.subr.mxu0 0.0
    %1036 = vmatpush1.msra.mxu0 0.0
    %1037 = vmatprep.subr.mxu0 0.0
    %1038 = vmatpush1.msra.mxu0 0.0
    %1039 = vmatprep.subr.mxu0 0.0
    %1040 = vmatpush1.msra.mxu0 0.0
    %1041 = vmatprep.subr.mxu0 0.0
    %1042 = vmatpush1.msra.mxu0 0.0
    %1043 = vmatprep.subr.mxu0 0.0
    %1044 = vmatpush1.msra.mxu0 0.0
    %1045 = vmatprep.subr.mxu0 0.0
    %1046 = vmatpush1.msra.mxu0 0.0
    %1047 = vmatprep.subr.mxu0 0.0
    %1048 = vmatpush1.msra.mxu0 0.0
    %1049 = vmatprep.subr.mxu0 0.0
    %1050 = vmatpush1.msra.mxu0 0.0
    %1051 = vmatprep.subr.mxu0 0.0
    %1052 = vmatpush1.msra.mxu0 0.0
    %1053 = vmatprep.subr.mxu0 0.0
    %1054 = vmatpush1.msra.mxu0 0.0
    %1055 = vmatprep.mubr.f32.mxu0 0.0
    %1056 = vmatmul.mubr.f32.gmra.mrb[0].mxu0 %v983
    %v1057 = vpop.f32.mrb[0].mxu0
    %v1058 = vadd.f32 0.0, %v1057
    %v1059 = vpop.f32.mrb[0].mxu0
    %1060 = vmatprep.mubr.f32.mxu0 0.0
    %1061 = vmatmul.mubr.f32.gmra.mrb[0].mxu0 %v986
    %v1062 = vpop.f32.mrb[0].mxu0
    %v1063 = vadd.f32 0.0, %v1062
    %v1064 = vpop.f32.mrb[0].mxu0
    %1065 = vmatprep.mubr.f32.mxu0 0.0
    %1066 = vmatmul.mubr.f32.gmra.mrb[0].mxu0 %v989
    %v1067 = vpop.f32.mrb[0].mxu0
    %v1068 = vadd.f32 0.0, %v1067
    %v1069 = vpop.f32.mrb[0].mxu0
    %1070 = vdwg.mxu0
    %v1071 = vmul.f32 %v1058, %v397
    %v1072 = vmul.f32 %v1063, %v397
    %v1073 = vmul.f32 %v1068, %v397
    %v1074 = vadd.f32 %v1071, %v406
    %v1075 = vadd.f32 %v1072, %v406
    %v1076 = vadd.f32 %v1073, %v406
    %v1077 = vmax.f32 %v1074, 0.0
    %v1078 = vmax.f32 %v1075, 0.0
    %v1079 = vmax.f32 %v1076, 0.0
    %v1080 = vsel %vm303, %v1077, 0.0
    %v1081 = vsel %vm303, %v1078, 0.0
    %v1082 = vsel %vm303, %v1079, 0.0
    %v1086 = vrot.slane %v1080, 7
    %v1087 = vrot.slane %v1081, 7
    %v1088 = vsel %vm260, %v1086, %v1087
    %v1089 = vrot.slane %v1082, 7
    %v1090 = vsel %vm260, %v1087, %v1089
    %v1094 = vsel %vm260, -inf, %v1086
    %1095 = vst [vmem:[#allocation2] sm:$0xff] %v1094
    %1096 = vst [vmem:[#allocation2 + $0x8] sm:$0xff] %v1088
    %1097 = vst [vmem:[#allocation2 + $0x10] sm:$0x3] %v1090
    %v1098 = vld [vmem:[#allocation2] ss:$2 sm:$0xff]
    %v1099 = vld [vmem:[%s433] ss:$2 sm:$0x1]
    %v1100 = vld [vmem:[%s435] ss:$2 sm:$0xff]
    %v1101 = vld [vmem:[%s437] ss:$2 sm:$0x1]
    %v1102 = vmax.f32 %v1098, %v1100
    %v1103 = vmax.f32 %v1099, %v1101
    %v1106 = vrot.slane %v1102, 4
    %v1107 = vrot.slane %v1103, 4
    %v1108 = vsel %vm160, %v1106, %v1107
    %v1111 = vsel %vm160, 0.0, %v1106
    %v1112 = vsel %vm201, %v1108, 0.0
    %v1115 = vrot.slane %v1111, 1
    %v1116 = vrot.slane %v1112, 1
    %v1117 = vsel %vm171, %v1115, %v1116
    %1118 = vrot.lane.b32.xlu0 %v1117, 32
    %v1119 = vpop.permute.xlu0 %1118
    %1120 = vrot.lane.b32.xlu0 %v1116, 32
    %v1121 = vpop.permute.xlu0 %1120
    %v1124 = vrot.slane %v1111, 2
    %v1125 = vrot.slane %v1112, 2
    %v1126 = vsel %vm186, %v1124, %v1125
    %1127 = vrot.lane.b32.xlu0 %v1126, 64
    %v1128 = vpop.permute.xlu0 %1127
    %1129 = vrot.lane.b32.xlu0 %v1125, 64
    %v1130 = vpop.permute.xlu0 %1129
    %v1133 = vrot.slane %v1111, 3
    %v1134 = vrot.slane %v1112, 3
    %v1135 = vsel %vm201, %v1133, %v1134
    %1136 = vrot.lane.b32.xlu0 %v1135, 96
    %v1137 = vpop.permute.xlu0 %1136
    %1138 = vrot.lane.b32.xlu0 %v1134, 96
    %v1139 = vpop.permute.xlu0 %1138
    %v1142 = vrot.slane %v1111, 4
    %v1143 = vrot.slane %v1112, 4
    %v1144 = vsel %vm160, %v1142, %v1143
    %v1147 = vrot.slane %v1111, 5
    %v1148 = vrot.slane %v1112, 5
    %v1149 = vsel %vm230, %v1147, %v1148
    %1150 = vrot.lane.b32.xlu0 %v1149, 32
    %v1151 = vpop.permute.xlu0 %1150
    %1152 = vrot.lane.b32.xlu0 %v1148, 32
    %v1153 = vpop.permute.xlu0 %1152
    %v1156 = vrot.slane %v1111, 6
    %v1157 = vrot.slane %v1112, 6
    %v1158 = vsel %vm245, %v1156, %v1157
    %1159 = vrot.lane.b32.xlu0 %v1158, 64
    %v1160 = vpop.permute.xlu0 %1159
    %1161 = vrot.lane.b32.xlu0 %v1157, 64
    %v1162 = vpop.permute.xlu0 %1161
    %v1165 = vrot.slane %v1111, 7
    %v1166 = vrot.slane %v1112, 7
    %v1167 = vsel %vm260, %v1165, %v1166
    %v1168 = vsel %vm260, %v1166, %v506
    %1169 = vrot.lane.b32.xlu0 %v1167, 96
    %v1170 = vpop.permute.xlu0 %1169
    %1171 = vrot.lane.b32.xlu0 %v1168, 96
    %v1172 = vpop.permute.xlu0 %1171
    %v1175 = vsel %vm303, %v1111, %v1119
    %v1176 = vsel %vm303, %v1112, %v1121
    %v1177 = vsel %vm516, %v1175, %v1128
    %v1178 = vsel %vm516, %v1176, %v1130
    %v1179 = vsel %vm519, %v1177, %v1137
    %v1180 = vsel %vm519, %v1178, %v1139
    %v1181 = vsel %vm303, %v1144, %v1151
    %v1182 = vsel %vm303, %v1143, %v1153
    %v1183 = vsel %vm516, %v1181, %v1160
    %v1184 = vsel %vm516, %v1182, %v1162
    %v1185 = vsel %vm519, %v1183, %v1170
    %v1186 = vsel %vm519, %v1184, %v1172
    %1187 = vmatprep.subr.mxu0 0.0
    %1188 = vmatpush1.msra.mxu0 %v56
    %1189 = vmatprep.subr.mxu0 0.0
    %1190 = vmatpush1.msra.mxu0 %v57
    %1191 = vmatprep.subr.mxu0 0.0
    %1192 = vmatpush1.msra.mxu0 %v58
    %1193 = vmatprep.subr.mxu0 0.0
    %1194 = vmatpush1.msra.mxu0 %v59
    %1195 = vmatprep.subr.mxu0 0.0
    %1196 = vmatpush1.msra.mxu0 %v60
    %1197 = vmatprep.subr.mxu0 0.0
    %1198 = vmatpush1.msra.mxu0 %v61
    %1199 = vmatprep.subr.mxu0 0.0
    %1200 = vmatpush1.msra.mxu0 %v62
    %1201 = vmatprep.subr.mxu0 0.0
    %1202 = vmatpush1.msra.mxu0 %v63
    %1203 = vmatprep.subr.mxu0 0.0
    %1204 = vmatpush1.msra.mxu0 %v64
    %1205 = vmatprep.subr.mxu0 0.0
    %1206 = vmatpush1.msra.mxu0 %v65
    %1207 = vmatprep.subr.mxu0 0.0
    %1208 = vmatpush1.msra.mxu0 %v66
    %1209 = vmatprep.subr.mxu0 0.0
    %1210 = vmatpush1.msra.mxu0 %v67
    %1211 = vmatprep.subr.mxu0 0.0
    %1212 = vmatpush1.msra.mxu0 %v68
    %1213 = vmatprep.subr.mxu0 0.0
    %1214 = vmatpush1.msra.mxu0 %v69
    %1215 = vmatprep.subr.mxu0 0.0
    %1216 = vmatpush1.msra.mxu0 %v70
    %1217 = vmatprep.subr.mxu0 0.0
    %1218 = vmatpush1.msra.mxu0 %v71
    %1219 = vmatprep.subr.mxu0 0.0
    %1220 = vmatpush1.msra.mxu0 %v72
    %1221 = vmatprep.subr.mxu0 0.0
    %1222 = vmatpush1.msra.mxu0 %v73
    %1223 = vmatprep.subr.mxu0 0.0
    %1224 = vmatpush1.msra.mxu0 %v74
    %1225 = vmatprep.subr.mxu0 0.0
    %1226 = vmatpush1.msra.mxu0 %v75
    %1227 = vmatprep.subr.mxu0 0.0
    %1228 = vmatpush1.msra.mxu0 %v76
    %1229 = vmatprep.subr.mxu0 0.0
    %1230 = vmatpush1.msra.mxu0 %v77
    %1231 = vmatprep.subr.mxu0 0.0
    %1232 = vmatpush1.msra.mxu0 %v78
    %1233 = vmatprep.subr.mxu0 0.0
    %1234 = vmatpush1.msra.mxu0 %v79
    %1235 = vmatprep.subr.mxu0 0.0
    %1236 = vmatpush1.msra.mxu0 %v80
    %1237 = vmatprep.subr.mxu0 0.0
    %1238 = vmatpush1.msra.mxu0 %v81
    %1239 = vmatprep.subr.mxu0 0.0
    %1240 = vmatpush1.msra.mxu0 %v82
    %1241 = vmatprep.subr.mxu0 0.0
    %1242 = vmatpush1.msra.mxu0 %v83
    %1243 = vmatprep.subr.mxu0 0.0
    %1244 = vmatpush1.msra.mxu0 %v84
    %1245 = vmatprep.subr.mxu0 0.0
    %1246 = vmatpush1.msra.mxu0 %v85
    %1247 = vmatprep.subr.mxu0 0.0
    %1248 = vmatpush1.msra.mxu0 %v86
    %1249 = vmatprep.subr.mxu0 0.0
    %1250 = vmatpush1.msra.mxu0 %v87
    %1251 = vmatprep.mubr.f32.mxu0 %v1185
    %1252 = vmatmul.mubr.f32.gmra.mrb[0].mxu0 %v1179
    %v1253 = vpop.f32.mrb[0].mxu0
    %v1254 = vadd.f32 0.0, %v1253
    %v1255 = vpop.f32.mrb[0].mxu0
    %1256 = vmatprep.mubr.f32.mxu0 %v1186
    %1257 = vmatmul.mubr.f32.gmra.mrb[0].mxu0 %v1180
    %v1258 = vpop.f32.mrb[0].mxu0
    %v1259 = vadd.f32 0.0, %v1258
    %v1260 = vpop.f32.mrb[0].mxu0
    %1261 = vdwg.mxu0
    %v1262 = vmul.f32 %v1254, %v607
    %v1263 = vmul.f32 %v1259, %v607
    %v1264 = vadd.f32 %v1262, %v615
    %v1265 = vadd.f32 %v1263, %v615
    %v1266 = vmax.f32 %v1264, 0.0
    %v1267 = vmax.f32 %v1265, 0.0
    %v1268 = vsel %vm516, %v1266, 0.0
    %v1269 = vsel %vm516, %v1267, 0.0
    %v1272 = vrot.slane %v1268, 7
    %v1273 = vrot.slane %v1269, 7
    %v1274 = vsel %vm260, %v1272, %v1273
    %v1277 = vsel %vm260, -inf, %v1272
    %v1278 = vsel %vm230, %v1274, -inf
    %1279 = vst [vmem:[#allocation3] sm:$0xff] %v1277
    %1280 = vst [vmem:[#allocation3 + $0x8] sm:$0xf] %v1278
    %v1281 = vld [vmem:[#allocation3] ss:$2 sm:$0x3f]
    %v1282 = vld [vmem:[%s635] ss:$2 sm:$0x3f]
    %v1283 = vmax.f32 %v1281, %v1282
    %v1285 = vrot.slane %v1283, 4
    %v1287 = vsel %vm160, 0.0, %v1285
    %v1288 = vsel %vm245, %v1285, 0.0
    %v1290 = vrot.slane %v1287, 1
    %1291 = vrot.lane.b32.xlu0 %v1290, 64
    %v1292 = vpop.permute.xlu0 %1291
    %v1295 = vrot.slane %v1287, 2
    %v1296 = vrot.slane %v1288, 2
    %v1297 = vsel %vm186, %v1295, %v1296
    %v1299 = vrot.slane %v1287, 3
    %v1300 = vrot.slane %v1288, 3
    %v1301 = vsel %vm201, %v1299, %v1300
    %1302 = vrot.lane.b32.xlu0 %v1301, 64
    %v1303 = vpop.permute.xlu0 %1302
    %v1305 = vrot.slane %v1287, 4
    %v1306 = vrot.slane %v1288, 4
    %v1307 = vsel %vm160, %v1305, %v1306
    %v1309 = vrot.slane %v1287, 5
    %v1310 = vrot.slane %v1288, 5
    %v1311 = vsel %vm230, %v1309, %v1310
    %1312 = vrot.lane.b32.xlu0 %v1311, 64
    %v1313 = vpop.permute.xlu0 %1312
    %v1315 = vrot.slane %v1287, 6
    %v1316 = vrot.slane %v1288, 6
    %v1317 = vsel %vm245, %v1315, %v1316
    %v1319 = vrot.slane %v1287, 7
    %v1320 = vrot.slane %v1288, 7
    %v1321 = vsel %vm260, %v1319, %v1320
    %1322 = vrot.lane.b32.xlu0 %v1321, 64
    %v1323 = vpop.permute.xlu0 %1322
    %v1325 = vsel %vm516, %v1287, %v1292
    %v1326 = vsel %vm516, %v1297, %v1303
    %v1327 = vsel %vm516, %v1307, %v1313
    %v1328 = vsel %vm516, %v1317, %v1323
    %1329 = vmatprep.subr.mxu0 0.0
    %1330 = vmatpush1.msra.mxu0 %v90
    %1331 = vmatprep.subr.mxu0 0.0
    %1332 = vmatpush1.msra.mxu0 %v91
    %1333 = vmatprep.subr.mxu0 0.0
    %1334 = vmatpush1.msra.mxu0 %v92
    %1335 = vmatprep.subr.mxu0 0.0
    %1336 = vmatpush1.msra.mxu0 %v93
    %1337 = vmatprep.subr.mxu0 0.0
    %1338 = vmatpush1.msra.mxu0 %v94
    %1339 = vmatprep.subr.mxu0 0.0
    %1340 = vmatpush1.msra.mxu0 %v95
    %1341 = vmatprep.subr.mxu0 0.0
    %1342 = vmatpush1.msra.mxu0 %v96
    %1343 = vmatprep.subr.mxu0 0.0
    %1344 = vmatpush1.msra.mxu0 %v97
    %1345 = vmatprep.subr.mxu0 0.0
    %1346 = vmatpush1.msra.mxu0 %v98
    %1347 = vmatprep.subr.mxu0 0.0
    %1348 = vmatpush1.msra.mxu0 %v99
    %1349 = vmatprep.subr.mxu0 0.0
    %1350 = vmatpush1.msra.mxu0 %v100
    %1351 = vmatprep.subr.mxu0 0.0
    %1352 = vmatpush1.msra.mxu0 %v101
    %1353 = vmatprep.subr.mxu0 0.0
    %1354 = vmatpush1.msra.mxu0 %v102
    %1355 = vmatprep.subr.mxu0 0.0
    %1356 = vmatpush1.msra.mxu0 %v103
    %1357 = vmatprep.subr.mxu0 0.0
    %1358 = vmatpush1.msra.mxu0 %v104
    %1359 = vmatprep.subr.mxu0 0.0
    %1360 = vmatpush1.msra.mxu0 %v105
    %1361 = vmatprep.subr.mxu0 0.0
    %1362 = vmatpush1.msra.mxu0 %v106
    %1363 = vmatprep.subr.mxu0 0.0
    %1364 = vmatpush1.msra.mxu0 %v107
    %1365 = vmatprep.subr.mxu0 0.0
    %1366 = vmatpush1.msra.mxu0 %v108
    %1367 = vmatprep.subr.mxu0 0.0
    %1368 = vmatpush1.msra.mxu0 %v109
    %1369 = vmatprep.subr.mxu0 0.0
    %1370 = vmatpush1.msra.mxu0 %v110
    %1371 = vmatprep.subr.mxu0 0.0
    %1372 = vmatpush1.msra.mxu0 %v111
    %1373 = vmatprep.subr.mxu0 0.0
    %1374 = vmatpush1.msra.mxu0 %v112
    %1375 = vmatprep.subr.mxu0 0.0
    %1376 = vmatpush1.msra.mxu0 %v113
    %1377 = vmatprep.subr.mxu0 0.0
    %1378 = vmatpush1.msra.mxu0 %v114
    %1379 = vmatprep.subr.mxu0 0.0
    %1380 = vmatpush1.msra.mxu0 %v115
    %1381 = vmatprep.subr.mxu0 0.0
    %1382 = vmatpush1.msra.mxu0 %v116
    %1383 = vmatprep.subr.mxu0 0.0
    %1384 = vmatpush1.msra.mxu0 %v117
    %1385 = vmatprep.subr.mxu0 0.0
    %1386 = vmatpush1.msra.mxu0 %v118
    %1387 = vmatprep.subr.mxu0 0.0
    %1388 = vmatpush1.msra.mxu0 %v119
    %1389 = vmatprep.subr.mxu0 0.0
    %1390 = vmatpush1.msra.mxu0 %v120
    %1391 = vmatprep.subr.mxu0 0.0
    %1392 = vmatpush1.msra.mxu0 %v121
    %1393 = vmatprep.mubr.f32.mxu0 %v1326
    %1394 = vmatmul.mubr.f32.gmra.mrb[0].mxu0 %v1325
    %v1395 = vpop.f32.mrb[0].mxu0
    %v1396 = vadd.f32 0.0, %v1395
    %v1397 = vpop.f32.mrb[0].mxu0
    %1398 = vdwg.mxu0
    %1399 = vmatprep.subr.mxu0 0.0
    %1400 = vmatpush1.msra.mxu0 %v122
    %1401 = vmatprep.subr.mxu0 0.0
    %1402 = vmatpush1.msra.mxu0 %v123
    %1403 = vmatprep.subr.mxu0 0.0
    %1404 = vmatpush1.msra.mxu0 %v124
    %1405 = vmatprep.subr.mxu0 0.0
    %1406 = vmatpush1.msra.mxu0 %v125
    %1407 = vmatprep.subr.mxu0 0.0
    %1408 = vmatpush1.msra.mxu0 %v126
    %1409 = vmatprep.subr.mxu0 0.0
    %1410 = vmatpush1.msra.mxu0 %v127
    %1411 = vmatprep.subr.mxu0 0.0
    %1412 = vmatpush1.msra.mxu0 %v128
    %1413 = vmatprep.subr.mxu0 0.0
    %1414 = vmatpush1.msra.mxu0 %v129
    %1415 = vmatprep.subr.mxu0 0.0
    %1416 = vmatpush1.msra.mxu0 %v130
    %1417 = vmatprep.subr.mxu0 0.0
    %1418 = vmatpush1.msra.mxu0 %v131
    %1419 = vmatprep.subr.mxu0 0.0
    %1420 = vmatpush1.msra.mxu0 %v132
    %1421 = vmatprep.subr.mxu0 0.0
    %1422 = vmatpush1.msra.mxu0 %v133
    %1423 = vmatprep.subr.mxu0 0.0
    %1424 = vmatpush1.msra.mxu0 %v134
    %1425 = vmatprep.subr.mxu0 0.0
    %1426 = vmatpush1.msra.mxu0 %v135
    %1427 = vmatprep.subr.mxu0 0.0
    %1428 = vmatpush1.msra.mxu0 %v136
    %1429 = vmatprep.subr.mxu0 0.0
    %1430 = vmatpush1.msra.mxu0 %v137
    %1431 = vmatprep.subr.mxu0 0.0
    %1432 = vmatpush1.msra.mxu0 %v138
    %1433 = vmatprep.subr.mxu0 0.0
    %1434 = vmatpush1.msra.mxu0 %v139
    %1435 = vmatprep.subr.mxu0 0.0
    %1436 = vmatpush1.msra.mxu0 %v140
    %1437 = vmatprep.subr.mxu0 0.0
    %1438 = vmatpush1.msra.mxu0 %v141
    %1439 = vmatprep.subr.mxu0 0.0
    %1440 = vmatpush1.msra.mxu0 %v142
    %1441 = vmatprep.subr.mxu0 0.0
    %1442 = vmatpush1.msra.mxu0 %v143
    %1443 = vmatprep.subr.mxu0 0.0
    %1444 = vmatpush1.msra.mxu0 %v144
    %1445 = vmatprep.subr.mxu0 0.0
    %1446 = vmatpush1.msra.mxu0 %v145
    %1447 = vmatprep.subr.mxu0 0.0
    %1448 = vmatpush1.msra.mxu0 %v146
    %1449 = vmatprep.subr.mxu0 0.0
    %1450 = vmatpush1.msra.mxu0 %v147
    %1451 = vmatprep.subr.mxu0 0.0
    %1452 = vmatpush1.msra.mxu0 %v148
    %1453 = vmatprep.subr.mxu0 0.0
    %1454 = vmatpush1.msra.mxu0 %v149
    %1455 = vmatprep.subr.mxu0 0.0
    %1456 = vmatpush1.msra.mxu0 %v150
    %1457 = vmatprep.subr.mxu0 0.0
    %1458 = vmatpush1.msra.mxu0 %v151
    %1459 = vmatprep.subr.mxu0 0.0
    %1460 = vmatpush1.msra.mxu0 %v152
    %1461 = vmatprep.subr.mxu0 0.0
    %1462 = vmatpush1.msra.mxu0 %v153
    %1463 = vmatprep.mubr.f32.mxu0 %v1328
    %1464 = vmatmul.mubr.f32.gmra.mrb[0].mxu0 %v1327
    %v1465 = vpop.f32.mrb[0].mxu0
    %v1466 = vadd.f32 %v1396, %v1465
    %v1467 = vpop.f32.mrb[0].mxu0
    %1468 = vdwg.mxu0
    %v1469 = vmul.f32 %v1466, %v827
    %v1470 = vadd.f32 %v1469, %v834
    %v1471 = vmax.f32 %v1470, 0.0
    %v1473 = vrot.slane %v1471, 7
    %v1475 = vsel %vm260, -inf, %v1473
    %1476 = vst [vmem:[#allocation4] sm:$0xff] %v1475
    %v1477 = vld [vmem:[#allocation4] ss:$2 sm:$0xf]
    %v1478 = vld [vmem:[%s844] ss:$2 sm:$0xf]
    %v1479 = vmax.f32 %v1477, %v1478
    %s1480 = scalar_lea.vmem [#allocation8], 4
    %1481 = vst [vmem:[%s1480] sm:$0xf] %v1479
    // Predicated region
    $region46: #{tpu_custom_call.1} parent=1 // pred_check
      _
    $region47: #{tpu_custom_call.1} parent=1 // pred_check_branch
      %1483 = sbr.rel (0) target = $region49
    $region48: #{tpu_custom_call.1} parent=1 // pred_region
      %s1485 = ssub.s32 128, 128
      %1486 = vsyncadd [#allocation7], %s1485
      %s1487 = sshll.u32 [#allocation8], 4
      %s1488 = int_to_ptr.vmem [resolvable:$true] %s1487
      %1493 = dma.vmem_to_hbm [thread:$0]  %s1488, 128, %s10, [#allocation7], 64, 64, 4
    $region49: #{tpu_custom_call.1} parent=1 // pred_fallthru
      _
    // Predicated region
    $region50: #{tpu_custom_call.1} parent=1 // pred_check
      _
    $region51: #{tpu_custom_call.1} parent=1 // pred_check_branch
      %1495 = sbr.rel (0) target = $region53
    $region52: #{tpu_custom_call.1} parent=1 // pred_region
      %1496 = dma.done [#allocation7], 128
    $region53: #{tpu_custom_call.1} parent=1 // pred_fallthru
      _
    %1497 = vsyncpa [#allocation6], 1
    %1498 = vsyncpa [#allocation7], 1

</llo_original>
